<compile_context>
chip_gen: v6e
topology: v6e:2x2x1
jax: 0.10.0
libtpu: 0.0.40
codegen_flags: <defaults>
</compile_context>

<pallas_src>
import functools
import math

import jax
import jax.numpy as jnp
from jax import lax
from jax.experimental import pallas as pl
from jax.experimental.pallas import tpu as pltpu

SHRINK_THRES = 0.0025   # MemoryUnit shrink_thres
HSR_EPS = 1e-12         # epsilon in hard_shrink_relu
L1_EPS = 1e-12          # eps of F.normalize(p=1)


def _mem_kernel(x_ref, a_ref, w_ref, o_ref, *, channels, mem_dim, fea_dim):
    C, M, F = channels, mem_dim, fea_dim
    a = a_ref[...]                              # (C*M, C*F) bf16, VMEM-resident
    x = x_ref[...].astype(a.dtype)              # (b_tile, C*F): f32 -> bf16 (VPU slack)

    # Attention logits for every output channel at once: (b_tile, C*M).
    # Contract the last dims of both operands so no transposed copy of A exists.
    logits = lax.dot_general(
        x, a, dimension_numbers=(((1,), (1,)), ((), ())),
        preferred_element_type=jnp.float32)

    # Channel-axis reductions via 128-aligned lane slices: cols[c] is (b_tile, M),
    # batch rows on sublanes / M on lanes, so each reduction step is a full-vreg
    # VPU op with no relayout.
    cols = [logits[:, c * M:(c + 1) * M] for c in range(C)]

    # softmax over the channel axis (nn.Softmax(dim=1) on (B, C, M)).
    cmax = cols[0]
    for c in range(1, C):
        cmax = jnp.maximum(cmax, cols[c])
    exps = [jnp.exp(col - cmax) for col in cols]
    den = exps[0]
    for c in range(1, C):
        den = den + exps[c]
    inv_den = pl.reciprocal(den, approx=True)
    atts = [e * inv_den for e in exps]

    # hard_shrink_relu(a, l): relu(a-l)*a/(|a-l|+1e-12) == where(a > l, a, 0) for
    # the non-negative softmax outputs (difference confined to a ~1e-9 band).
    atts = [jnp.where(av > SHRINK_THRES, av, 0.0) for av in atts]

    # L1-normalize over the channel axis (F.normalize(p=1, dim=1), eps clamp);
    # entries are >= 0 so their sum is already the L1 norm.
    l1 = atts[0]
    for c in range(1, C):
        l1 = l1 + atts[c]
    inv_l1 = pl.reciprocal(jnp.maximum(l1, L1_EPS), approx=True)

    # Reconstruct per channel and store into the matching 128-aligned lane slab
    # of the contiguous (b_tile, C*F) output block (== (b_tile, C, H, W) rows).
    w = w_ref[...]                               # (M, F) bf16, VMEM-resident
    for c in range(C):
        att_c = (atts[c] * inv_l1).astype(w.dtype)
        rec = jnp.dot(att_c, w, preferred_element_type=jnp.float32)
        o_ref[:, c * F:(c + 1) * F] = jax.nn.sigmoid(rec).astype(o_ref.dtype)


def _build_scrambled_weight(weight, channels, fea_dim):
    """Fold the permute(0,2,3,1).reshape scramble into the first matmul's weight.

    Returns A of shape (C*M, C*F) with
        A[(c', m), (c, hw)] = W[m, (hw*C + c) % F]  if (hw*C + c) // F == c' else 0,
    so that feathers.reshape(B, C*F) @ A.T equals the attention logits of the
    scrambled input exactly.  Built once per call on the (small) weight matrix.
    """
    mem_dim = weight.shape[0]
    C, F = channels, fea_dim
    c_idx = jnp.arange(C)[:, None]               # (C, 1)
    hw_idx = jnp.arange(F)[None, :]              # (1, F)
    t = hw_idx * C + c_idx                       # (C, F): scrambled flat pos of (c, hw)
    col = t % F                                  # weight column multiplying source (c, hw)
    row = t // F                                 # output channel c' that (c, hw) feeds
    gathered = weight[:, col]                    # (M, C, F)
    onehot = (jnp.arange(C)[:, None, None] == row[None, :, :]).astype(weight.dtype)
    a = onehot[:, None, :, :] * gathered[None, :, :, :]     # (C', M, C, F)
    return a.reshape(C * mem_dim, C * F)


def _pick_b_tile(batch, row_bytes, target_bytes=2 << 20, cap_bytes=4 << 20):
    """Pick the batch tile.

    Constraints / preferences (perf review):
      * must divide `batch`; multiple of 8 whenever the grid has >1 step
        (sublane tile / BlockSpec divisibility),
      * blocks of roughly [target_bytes, cap_bytes] so per-step DMA reaches the
        HBM roofline without bloating VMEM,
      * leave >= 2 grid steps when possible so the "parallel" batch axis can be
        split across v7x's two TensorCores.
    """
    legal = [d for d in range(8, batch + 1, 8)
             if batch % d == 0 and d * row_bytes <= cap_bytes]
    if legal:
        big_enough = [d for d in legal if d * row_bytes >= target_bytes]
        if big_enough:
            multi = [d for d in big_enough if batch // d >= 2]
            return min(multi) if multi else min(big_enough)
        return max(legal)
    # No legal multi-step tiling -> run the whole batch as one full-extent block.
    return batch


def mem_module_forward(feathers, weight, *, b_tile=None, out_dtype=None):
    """feathers: (B, C, H, W); weight: (mem_dim, fea_dim) with fea_dim == H*W."""
    B, C, H, W = feathers.shape
    F = H * W
    M, Fw = weight.shape
    assert Fw == F, "configs.dim (fea_dim) must equal H*W"
    if out_dtype is None:
        out_dtype = feathers.dtype   # bf16 output is opt-in (halves writeback traffic)

    # Scramble-fused first-layer weight + reconstruction weight (both MXU bf16,
    # resident in VMEM).  A is (C*M, C*F); the fused-scramble path assumes a small
    # channel count (C=4 here) so it stays tiny.
    a_bytes = (C * M) * (C * F) * 2
    assert a_bytes <= (16 << 20), "fused-scramble weight too large for VMEM"
    # TODO(synk): add an unfused (wrapper-scramble) fallback for large channel counts.
    a_bf16 = _build_scrambled_weight(weight, C, F).astype(jnp.bfloat16)
    w_bf16 = weight.astype(jnp.bfloat16)

    # Contiguous flat view of the input -- a free metadata reshape, no HBM pass.
    x_flat = feathers.reshape(B, C * F)

    in_itemsize = jnp.dtype(feathers.dtype).itemsize
    out_itemsize = jnp.dtype(out_dtype).itemsize
    row_bytes = C * F * max(in_itemsize, out_itemsize)
    if b_tile is None:
        b_tile = _pick_b_tile(B, row_bytes)
    assert B % b_tile == 0
    grid_b = B // b_tile

    # VMEM budget: double-buffered streamed blocks, resident A/W (counted twice
    # for their spare pipeline buffers), f32 logits/att intermediates, plus slack
    # for compiler scratch.  Cap below the generation's physical VMEM.
    x_blk = b_tile * C * F * in_itemsize
    o_blk = b_tile * C * F * out_itemsize
    w_bytes = M * F * 2
    interm = 4 * b_tile * C * M * 4
    need = 2 * (x_blk + o_blk) + 2 * (a_bytes + w_bytes) + interm + (4 << 20)
    try:
        vmem_cap = pltpu.get_tpu_info().vmem_capacity_bytes
    except Exception:
        vmem_cap = 64 << 20          # conservative fallback: v7x per-core VMEM
    vmem_limit = int(max(16 << 20, min(need, int(vmem_cap * 0.85))))

    kernel = functools.partial(_mem_kernel, channels=C, mem_dim=M, fea_dim=F)

    out = pl.pallas_call(
        kernel,
        out_shape=jax.ShapeDtypeStruct((B, C * F), out_dtype),
        grid_spec=pltpu.PrefetchScalarGridSpec(
            num_scalar_prefetch=0,
            grid=(grid_b,),
            in_specs=[
                pl.BlockSpec((b_tile, C * F), lambda i: (i, 0)),
                # Constant index_maps: fetched once, resident across the grid.
                pl.BlockSpec((C * M, C * F), lambda i: (0, 0)),
                pl.BlockSpec((M, F), lambda i: (0, 0)),
            ],
            out_specs=pl.BlockSpec((b_tile, C * F), lambda i: (i, 0)),
        ),
        compiler_params=pltpu.CompilerParams(
            dimension_semantics=("parallel",),
            vmem_limit_bytes=vmem_limit),
    )(x_flat, a_bf16, w_bf16)

    # .view(feacher_shape): plain contiguous reshape back to (B, C, H, W).
    return out.reshape(B, C, H, W)


def _reference_forward(feathers, weight):
    """Pure-JAX f32 reference of the PyTorch MemModule forward (validation only)."""
    B, C, H, W = feathers.shape
    F = H * W
    x = jnp.transpose(feathers, (0, 2, 3, 1)).reshape(B, C, F)
    att = jnp.einsum("bcf,mf->bcm", x, weight)
    att = jax.nn.softmax(att, axis=1)
    shifted = att - SHRINK_THRES
    att = jnp.maximum(shifted, 0.0) * att / (jnp.abs(shifted) + HSR_EPS)
    att = att / jnp.maximum(jnp.sum(jnp.abs(att), axis=1, keepdims=True), L1_EPS)
    out = jnp.einsum("bcm,mf->bcf", att, weight)
    return jax.nn.sigmoid(out).reshape(B, C, H, W)


def init_memory_weight(key, mem_dim, fea_dim, dtype=jnp.float32):
    # PyTorch reset_parameters: uniform(-stdv, stdv), stdv = 1/sqrt(fea_dim)
    stdv = 1.0 / math.sqrt(fea_dim)
    return jax.random.uniform(
        key, (mem_dim, fea_dim), dtype=dtype, minval=-stdv, maxval=stdv)


if __name__ == "__main__":
    # Small shapes consistent with the module:
    #   configs.dim = H*W = 256 (fea_dim), configs.memoryMod_params = 128 (mem_dim)
    B, C, H, W = 2, 4, 16, 16
    MEM_DIM = 128
    FEA_DIM = H * W

    key = jax.random.PRNGKey(0)
    k_x, k_w = jax.random.split(key)

    feathers = jax.random.normal(k_x, (B, C, H, W), dtype=jnp.float32)
    weight = init_memory_weight(k_w, MEM_DIM, FEA_DIM)

    out = mem_module_forward(feathers, weight)
    out = jax.block_until_ready(out)

    assert out.shape == (B, C, H, W)
    assert bool(jnp.all(jnp.isfinite(out)))
    # Sigmoid output must lie in (0, 1).
    assert bool(jnp.all((out > 0.0) & (out < 1.0)))

    # Parity with the f32 PyTorch-equivalent reference (bf16 MXU + approx recip).
    ref = _reference_forward(feathers, weight)
    max_err = float(jnp.max(jnp.abs(out - ref)))
    assert max_err < 2e-2, f"mismatch vs reference: max abs err = {max_err}"

    print("KERNEL_OK")
</pallas_src>

<mosaic_0001>
module attributes {stable_mosaic.version = 11 : i64} {
  func.func @_mem_kernel(%arg0: i32, %arg1: memref<2x1024xf32, #tpu.memory_space<vmem>>, %arg2: memref<512x1024xbf16, #tpu.memory_space<vmem>>, %arg3: memref<128x256xbf16, #tpu.memory_space<vmem>>, %arg4: memref<2x1024xf32, #tpu.memory_space<vmem>>) attributes {dimension_semantics = [#tpu.dimension_semantics<parallel>], iteration_bounds = array<i64: 1>, scalar_prefetch = 0 : i64, scratch_operands = 0 : i64, tpu.core_type = #tpu.core_type<tc>, window_params = [{transform_indices = @transform_0, window_bounds = array<i64: 2, 1024>}, {pipeline_mode = #tpu.pipeline_mode<synchronous>, transform_indices = @transform_1, window_bounds = array<i64: 512, 1024>}, {pipeline_mode = #tpu.pipeline_mode<synchronous>, transform_indices = @transform_2, window_bounds = array<i64: 128, 256>}, {transform_indices = @transform_3, window_bounds = array<i64: 2, 1024>}]} {
    %c0 = arith.constant 0 : index
    %c0_0 = arith.constant 0 : index
    %0 = vector.load %arg2[%c0, %c0_0] : memref<512x1024xbf16, #tpu.memory_space<vmem>>, vector<512x1024xbf16>
    %c0_1 = arith.constant 0 : index
    %c0_2 = arith.constant 0 : index
    %1 = vector.load %arg1[%c0_1, %c0_2] : memref<2x1024xf32, #tpu.memory_space<vmem>>, vector<2x1024xf32>
    %2 = arith.truncf %1 : vector<2x1024xf32> to vector<2x1024xbf16>
    %cst = arith.constant dense<0.000000e+00> : vector<2x512xf32>
    %3 = tpu.matmul %2, %0, %cst {dimension_numbers = #tpu.dot_dimension_numbers<[1], [1], [0], [0], [0, 0, 1, 0], [], []>} : vector<2x1024xbf16>, vector<512x1024xbf16>, vector<2x512xf32> -> vector<2x512xf32>
    %4 = vector.extract_strided_slice %3 {offsets = [0, 0], sizes = [2, 128], strides = [1, 1]} : vector<2x512xf32> to vector<2x128xf32>
    %5 = vector.extract_strided_slice %3 {offsets = [0, 128], sizes = [2, 128], strides = [1, 1]} : vector<2x512xf32> to vector<2x128xf32>
    %6 = vector.extract_strided_slice %3 {offsets = [0, 256], sizes = [2, 128], strides = [1, 1]} : vector<2x512xf32> to vector<2x128xf32>
    %7 = vector.extract_strided_slice %3 {offsets = [0, 384], sizes = [2, 128], strides = [1, 1]} : vector<2x512xf32> to vector<2x128xf32>
    %8 = arith.maximumf %4, %5 : vector<2x128xf32>
    %9 = arith.maximumf %8, %6 : vector<2x128xf32>
    %10 = arith.maximumf %9, %7 : vector<2x128xf32>
    %11 = arith.subf %4, %10 : vector<2x128xf32>
    %12 = math.exp %11 : vector<2x128xf32>
    %13 = arith.subf %5, %10 : vector<2x128xf32>
    %14 = math.exp %13 : vector<2x128xf32>
    %15 = arith.subf %6, %10 : vector<2x128xf32>
    %16 = math.exp %15 : vector<2x128xf32>
    %17 = arith.subf %7, %10 : vector<2x128xf32>
    %18 = math.exp %17 : vector<2x128xf32>
    %19 = arith.addf %12, %14 : vector<2x128xf32>
    %20 = arith.addf %19, %16 : vector<2x128xf32>
    %21 = arith.addf %20, %18 : vector<2x128xf32>
    %22 = tpu.reciprocal %21 {approx = true} : vector<2x128xf32> -> vector<2x128xf32>
    %23 = arith.mulf %12, %22 : vector<2x128xf32>
    %24 = arith.mulf %14, %22 : vector<2x128xf32>
    %25 = arith.mulf %16, %22 : vector<2x128xf32>
    %26 = arith.mulf %18, %22 : vector<2x128xf32>
    %cst_3 = arith.constant 2.500000e-03 : f32
    %27 = vector.broadcast %cst_3 : f32 to vector<2x128xf32>
    %28 = arith.cmpf ogt, %23, %27 : vector<2x128xf32>
    %cst_4 = arith.constant 0.000000e+00 : f32
    %29 = vector.broadcast %cst_4 : f32 to vector<2x128xf32>
    %30 = arith.select %28, %23, %29 : vector<2x128xi1>, vector<2x128xf32>
    %cst_5 = arith.constant 2.500000e-03 : f32
    %31 = vector.broadcast %cst_5 : f32 to vector<2x128xf32>
    %32 = arith.cmpf ogt, %24, %31 : vector<2x128xf32>
    %cst_6 = arith.constant 0.000000e+00 : f32
    %33 = vector.broadcast %cst_6 : f32 to vector<2x128xf32>
    %34 = arith.select %32, %24, %33 : vector<2x128xi1>, vector<2x128xf32>
    %cst_7 = arith.constant 2.500000e-03 : f32
    %35 = vector.broadcast %cst_7 : f32 to vector<2x128xf32>
    %36 = arith.cmpf ogt, %25, %35 : vector<2x128xf32>
    %cst_8 = arith.constant 0.000000e+00 : f32
    %37 = vector.broadcast %cst_8 : f32 to vector<2x128xf32>
    %38 = arith.select %36, %25, %37 : vector<2x128xi1>, vector<2x128xf32>
    %cst_9 = arith.constant 2.500000e-03 : f32
    %39 = vector.broadcast %cst_9 : f32 to vector<2x128xf32>
    %40 = arith.cmpf ogt, %26, %39 : vector<2x128xf32>
    %cst_10 = arith.constant 0.000000e+00 : f32
    %41 = vector.broadcast %cst_10 : f32 to vector<2x128xf32>
    %42 = arith.select %40, %26, %41 : vector<2x128xi1>, vector<2x128xf32>
    %43 = arith.addf %30, %34 : vector<2x128xf32>
    %44 = arith.addf %43, %38 : vector<2x128xf32>
    %45 = arith.addf %44, %42 : vector<2x128xf32>
    %cst_11 = arith.constant 9.99999996E-13 : f32
    %46 = vector.broadcast %cst_11 : f32 to vector<2x128xf32>
    %47 = arith.maximumf %45, %46 : vector<2x128xf32>
    %48 = tpu.reciprocal %47 {approx = true} : vector<2x128xf32> -> vector<2x128xf32>
    %c0_12 = arith.constant 0 : index
    %c0_13 = arith.constant 0 : index
    %49 = vector.load %arg3[%c0_12, %c0_13] : memref<128x256xbf16, #tpu.memory_space<vmem>>, vector<128x256xbf16>
    %50 = arith.mulf %30, %48 : vector<2x128xf32>
    %51 = arith.truncf %50 : vector<2x128xf32> to vector<2x128xbf16>
    %cst_14 = arith.constant dense<0.000000e+00> : vector<2x256xf32>
    %52 = tpu.matmul %51, %49, %cst_14 {dimension_numbers = #tpu.dot_dimension_numbers<[1], [0], [0], [1], [0, 0, 1, 1], [], []>} : vector<2x128xbf16>, vector<128x256xbf16>, vector<2x256xf32> -> vector<2x256xf32>
    %53 = arith.negf %52 : vector<2x256xf32>
    %54 = math.exp %53 : vector<2x256xf32>
    %cst_15 = arith.constant 1.000000e+00 : f32
    %55 = vector.broadcast %cst_15 : f32 to vector<2x256xf32>
    %56 = arith.addf %55, %54 : vector<2x256xf32>
    %57 = arith.divf %55, %56 : vector<2x256xf32>
    %c0_16 = arith.constant 0 : index
    %c0_17 = arith.constant 0 : index
    %58 = vector.load %arg4[%c0_16, %c0_17] : memref<2x1024xf32, #tpu.memory_space<vmem>>, vector<2x256xf32>
    tpu.vector_store %arg4[%c0_16, %c0_17], %57 {strides = array<i32>} : memref<2x1024xf32, #tpu.memory_space<vmem>>, vector<2x256xf32>,
    %59 = arith.mulf %34, %48 : vector<2x128xf32>
    %60 = arith.truncf %59 : vector<2x128xf32> to vector<2x128xbf16>
    %cst_18 = arith.constant dense<0.000000e+00> : vector<2x256xf32>
    %61 = tpu.matmul %60, %49, %cst_18 {dimension_numbers = #tpu.dot_dimension_numbers<[1], [0], [0], [1], [0, 0, 1, 1], [], []>} : vector<2x128xbf16>, vector<128x256xbf16>, vector<2x256xf32> -> vector<2x256xf32>
    %62 = arith.negf %61 : vector<2x256xf32>
    %63 = math.exp %62 : vector<2x256xf32>
    %cst_19 = arith.constant 1.000000e+00 : f32
    %64 = vector.broadcast %cst_19 : f32 to vector<2x256xf32>
    %65 = arith.addf %64, %63 : vector<2x256xf32>
    %66 = arith.divf %64, %65 : vector<2x256xf32>
    %c0_20 = arith.constant 0 : index
    %c256 = arith.constant 256 : index
    %67 = vector.load %arg4[%c0_20, %c256] : memref<2x1024xf32, #tpu.memory_space<vmem>>, vector<2x256xf32>
    tpu.vector_store %arg4[%c0_20, %c256], %66 {strides = array<i32>} : memref<2x1024xf32, #tpu.memory_space<vmem>>, vector<2x256xf32>,
    %68 = arith.mulf %38, %48 : vector<2x128xf32>
    %69 = arith.truncf %68 : vector<2x128xf32> to vector<2x128xbf16>
    %cst_21 = arith.constant dense<0.000000e+00> : vector<2x256xf32>
    %70 = tpu.matmul %69, %49, %cst_21 {dimension_numbers = #tpu.dot_dimension_numbers<[1], [0], [0], [1], [0, 0, 1, 1], [], []>} : vector<2x128xbf16>, vector<128x256xbf16>, vector<2x256xf32> -> vector<2x256xf32>
    %71 = arith.negf %70 : vector<2x256xf32>
    %72 = math.exp %71 : vector<2x256xf32>
    %cst_22 = arith.constant 1.000000e+00 : f32
    %73 = vector.broadcast %cst_22 : f32 to vector<2x256xf32>
    %74 = arith.addf %73, %72 : vector<2x256xf32>
    %75 = arith.divf %73, %74 : vector<2x256xf32>
    %c0_23 = arith.constant 0 : index
    %c512 = arith.constant 512 : index
    %76 = vector.load %arg4[%c0_23, %c512] : memref<2x1024xf32, #tpu.memory_space<vmem>>, vector<2x256xf32>
    tpu.vector_store %arg4[%c0_23, %c512], %75 {strides = array<i32>} : memref<2x1024xf32, #tpu.memory_space<vmem>>, vector<2x256xf32>,
    %77 = arith.mulf %42, %48 : vector<2x128xf32>
    %78 = arith.truncf %77 : vector<2x128xf32> to vector<2x128xbf16>
    %cst_24 = arith.constant dense<0.000000e+00> : vector<2x256xf32>
    %79 = tpu.matmul %78, %49, %cst_24 {dimension_numbers = #tpu.dot_dimension_numbers<[1], [0], [0], [1], [0, 0, 1, 1], [], []>} : vector<2x128xbf16>, vector<128x256xbf16>, vector<2x256xf32> -> vector<2x256xf32>
    %80 = arith.negf %79 : vector<2x256xf32>
    %81 = math.exp %80 : vector<2x256xf32>
    %cst_25 = arith.constant 1.000000e+00 : f32
    %82 = vector.broadcast %cst_25 : f32 to vector<2x256xf32>
    %83 = arith.addf %82, %81 : vector<2x256xf32>
    %84 = arith.divf %82, %83 : vector<2x256xf32>
    %c0_26 = arith.constant 0 : index
    %c768 = arith.constant 768 : index
    %85 = vector.load %arg4[%c0_26, %c768] : memref<2x1024xf32, #tpu.memory_space<vmem>>, vector<2x256xf32>
    tpu.vector_store %arg4[%c0_26, %c768], %84 {strides = array<i32>} : memref<2x1024xf32, #tpu.memory_space<vmem>>, vector<2x256xf32>,
    return
  }
  func.func @transform_0(%arg0: i32) -> (i32, i32) {
    %c0_i32 = arith.constant 0 : i32
    %c0_i32_0 = arith.constant 0 : i32
    return %arg0, %c0_i32 : i32, i32
  }
  func.func @transform_1(%arg0: i32) -> (i32, i32) {
    %c0_i32 = arith.constant 0 : i32
    %c0_i32_0 = arith.constant 0 : i32
    %c0_i32_1 = arith.constant 0 : i32
    return %c0_i32, %c0_i32_0 : i32, i32
  }
  func.func @transform_2(%arg0: i32) -> (i32, i32) {
    %c0_i32 = arith.constant 0 : i32
    %c0_i32_0 = arith.constant 0 : i32
    %c0_i32_1 = arith.constant 0 : i32
    return %c0_i32, %c0_i32_0 : i32, i32
  }
  func.func @transform_3(%arg0: i32) -> (i32, i32) {
    %c0_i32 = arith.constant 0 : i32
    %c0_i32_0 = arith.constant 0 : i32
    return %arg0, %c0_i32 : i32, i32
  }
}

</mosaic_0001>

<llo_original>
// kernel: tpu_custom_call.1
$region0: #{tpu_custom_call.1}
  #allocation0 [shape = 'u32[]', space=smem, size = 0x4, offset = 0x4, fixed_abs, tag = 'smem constant byte address 0x4 - core index']
  #allocation1 [shape = 'u32[144,128]{1,0:T(1,128)}', space=vmem, size = 0x12000, scoped, tag = 'internal scratch']
  %s0 = inlined_call_operand.hbm [shape: f32[2,1024], index: 0, kind: input, shape index: {}]
  %s1 = inlined_call_operand.hbm [shape: bf16[512,1024], index: 1, kind: input, shape index: {}]
  %s2 = inlined_call_operand.hbm [shape: bf16[128,256], index: 2, kind: input, shape index: {}]
  %s3 = inlined_call_operand.hbm [shape: f32[2,1024], index: 3, kind: output, shape index: {}]
  %s4 = sld [smem:[#allocation0]]
  $region34: #{tpu_custom_call.1} parent=0
    _
  %s6 = ssub.s32 1, %s4
  %s7 = scalar_select 0, %s6, %s4
  $region1: #{tpu_custom_call.1} parent=0
    #allocation2 [shape = 'u8[8192]{0}', space=vmem, size = 0x2000, scoped, tag = 'input window, operand 0, single buffered']
    #allocation3 [shape = 's32[1]{0}', space=sflag, size = 0x4, scoped, tag = 'scoped memory for tpu_custom_call.1']
    #allocation4 [shape = 's32[1]{0}', space=sflag, size = 0x4, scoped, tag = 'scoped memory for tpu_custom_call.1']
    #allocation5 [shape = 'u8[1048576]{0}', space=vmem, size = 0x100000, scoped, tag = 'input window, operand 1, single buffered']
    #allocation6 [shape = 's32[1]{0}', space=sflag, size = 0x4, scoped, tag = 'scoped memory for tpu_custom_call.1']
    #allocation7 [shape = 'u8[65536]{0}', space=vmem, size = 0x10000, scoped, tag = 'input window, operand 2, single buffered']
    #allocation8 [shape = 'u8[8192]{0}', space=vmem, size = 0x2000, scoped, tag = 'output window, operand 0, single buffered']
    %8 = vsyncpa [#allocation3], 0
    %9 = vsyncpa [#allocation6], 0
    %10 = vsyncpa [#allocation4], 0
    // Predicated region
    $region2: #{tpu_custom_call.1} parent=1 // pred_check
      _
    $region3: #{tpu_custom_call.1} parent=1 // pred_check_branch
      %12 = sbr.rel (0) target = $region5
    $region4: #{tpu_custom_call.1} parent=1 // pred_region
      %s14 = ssub.s32 256, 256
      %15 = vsyncadd [#allocation3], %s14
      %s17 = sshll.u32 [#allocation2], 4
      %s18 = int_to_ptr.vmem [resolvable:$true] %s17
      %20 = dma.hbm_to_vmem [thread:$0]  %s0, 256, %s18, [#allocation3]
    $region5: #{tpu_custom_call.1} parent=1 // pred_fallthru
      _
    // Predicated region
    $region6: #{tpu_custom_call.1} parent=1 // pred_check
      _
    $region7: #{tpu_custom_call.1} parent=1 // pred_check_branch
      %22 = sbr.rel (0) target = $region9
    $region8: #{tpu_custom_call.1} parent=1 // pred_region
      %s24 = ssub.s32 32768, 32768
      %25 = vsyncadd [#allocation6], %s24
      %s26 = sshll.u32 [#allocation5], 4
      %s27 = int_to_ptr.vmem [resolvable:$true] %s26
      %32 = dma.hbm_to_vmem [thread:$0]  %s1, 32768, %s27, [#allocation6], 512, 512, 32
    $region9: #{tpu_custom_call.1} parent=1 // pred_fallthru
      _
    // Predicated region
    $region10: #{tpu_custom_call.1} parent=1 // pred_check
      _
    $region11: #{tpu_custom_call.1} parent=1 // pred_check_branch
      %34 = sbr.rel (0) target = $region13
    $region12: #{tpu_custom_call.1} parent=1 // pred_region
      %s36 = ssub.s32 2048, 2048
      %37 = vsyncadd [#allocation6], %s36
      %s38 = sshll.u32 [#allocation7], 4
      %s39 = int_to_ptr.vmem [resolvable:$true] %s38
      %44 = dma.hbm_to_vmem [thread:$0]  %s2, 2048, %s39, [#allocation6], 128, 128, 8
    $region13: #{tpu_custom_call.1} parent=1 // pred_fallthru
      _
    // Predicated region
    $region14: #{tpu_custom_call.1} parent=1 // pred_check
      _
    $region15: #{tpu_custom_call.1} parent=1 // pred_check_branch
      %46 = sbr.rel (0) target = $region17
    $region16: #{tpu_custom_call.1} parent=1 // pred_region
      %47 = dma.done [#allocation3], 256
    $region17: #{tpu_custom_call.1} parent=1 // pred_fallthru
      _
    // Predicated region
    $region18: #{tpu_custom_call.1} parent=1 // pred_check
      _
    $region19: #{tpu_custom_call.1} parent=1 // pred_check_branch
      %49 = sbr.rel (0) target = $region21
    $region20: #{tpu_custom_call.1} parent=1 // pred_region
      %50 = dma.done [#allocation6], 32768
    $region21: #{tpu_custom_call.1} parent=1 // pred_fallthru
      _
    // Predicated region
    $region22: #{tpu_custom_call.1} parent=1 // pred_check
      _
    $region23: #{tpu_custom_call.1} parent=1 // pred_check_branch
      %52 = sbr.rel (0) target = $region25
    $region24: #{tpu_custom_call.1} parent=1 // pred_region
      %53 = dma.done [#allocation6], 2048
    $region25: #{tpu_custom_call.1} parent=1 // pred_fallthru
      _
    %v55 = vld [vmem:[#allocation5] sm:$0xff]
    %v56 = vld [vmem:[#allocation5 + $0x8] sm:$0xff]
    %v57 = vld [vmem:[#allocation5 + $0x10] sm:$0xff]
    %v58 = vld [vmem:[#allocation5 + $0x18] sm:$0xff]
    %v59 = vld [vmem:[#allocation5 + $0x20] sm:$0xff]
    %v60 = vld [vmem:[#allocation5 + $0x28] sm:$0xff]
    %v61 = vld [vmem:[#allocation5 + $0x30] sm:$0xff]
    %v62 = vld [vmem:[#allocation5 + $0x38] sm:$0xff]
    %v63 = vld [vmem:[#allocation5 + $0x40] sm:$0xff]
    %v64 = vld [vmem:[#allocation5 + $0x48] sm:$0xff]
    %v65 = vld [vmem:[#allocation5 + $0x50] sm:$0xff]
    %v66 = vld [vmem:[#allocation5 + $0x58] sm:$0xff]
    %v67 = vld [vmem:[#allocation5 + $0x60] sm:$0xff]
    %v68 = vld [vmem:[#allocation5 + $0x68] sm:$0xff]
    %v69 = vld [vmem:[#allocation5 + $0x70] sm:$0xff]
    %v70 = vld [vmem:[#allocation5 + $0x78] sm:$0xff]
    %v71 = vld [vmem:[#allocation5 + $0x80] sm:$0xff]
    %v72 = vld [vmem:[#allocation5 + $0x88] sm:$0xff]
    %v73 = vld [vmem:[#allocation5 + $0x90] sm:$0xff]
    %v74 = vld [vmem:[#allocation5 + $0x98] sm:$0xff]
    %v75 = vld [vmem:[#allocation5 + $0xa0] sm:$0xff]
    %v76 = vld [vmem:[#allocation5 + $0xa8] sm:$0xff]
    %v77 = vld [vmem:[#allocation5 + $0xb0] sm:$0xff]
    %v78 = vld [vmem:[#allocation5 + $0xb8] sm:$0xff]
    %v79 = vld [vmem:[#allocation5 + $0xc0] sm:$0xff]
    %v80 = vld [vmem:[#allocation5 + $0xc8] sm:$0xff]
    %v81 = vld [vmem:[#allocation5 + $0xd0] sm:$0xff]
    %v82 = vld [vmem:[#allocation5 + $0xd8] sm:$0xff]
    %v83 = vld [vmem:[#allocation5 + $0xe0] sm:$0xff]
    %v84 = vld [vmem:[#allocation5 + $0xe8] sm:$0xff]
    %v85 = vld [vmem:[#allocation5 + $0xf0] sm:$0xff]
    %v86 = vld [vmem:[#allocation5 + $0xf8] sm:$0xff]
    %v87 = vld [vmem:[#allocation5 + $0x100] sm:$0xff]
    %v88 = vld [vmem:[#allocation5 + $0x108] sm:$0xff]
    %v89 = vld [vmem:[#allocation5 + $0x110] sm:$0xff]
    %v90 = vld [vmem:[#allocation5 + $0x118] sm:$0xff]
    %v91 = vld [vmem:[#allocation5 + $0x120] sm:$0xff]
    %v92 = vld [vmem:[#allocation5 + $0x128] sm:$0xff]
    %v93 = vld [vmem:[#allocation5 + $0x130] sm:$0xff]
    %v94 = vld [vmem:[#allocation5 + $0x138] sm:$0xff]
    %v95 = vld [vmem:[#allocation5 + $0x140] sm:$0xff]
    %v96 = vld [vmem:[#allocation5 + $0x148] sm:$0xff]
    %v97 = vld [vmem:[#allocation5 + $0x150] sm:$0xff]
    %v98 = vld [vmem:[#allocation5 + $0x158] sm:$0xff]
    %v99 = vld [vmem:[#allocation5 + $0x160] sm:$0xff]
    %v100 = vld [vmem:[#allocation5 + $0x168] sm:$0xff]
    %v101 = vld [vmem:[#allocation5 + $0x170] sm:$0xff]
    %v102 = vld [vmem:[#allocation5 + $0x178] sm:$0xff]
    %v103 = vld [vmem:[#allocation5 + $0x180] sm:$0xff]
    %v104 = vld [vmem:[#allocation5 + $0x188] sm:$0xff]
    %v105 = vld [vmem:[#allocation5 + $0x190] sm:$0xff]
    %v106 = vld [vmem:[#allocation5 + $0x198] sm:$0xff]
    %v107 = vld [vmem:[#allocation5 + $0x1a0] sm:$0xff]
    %v108 = vld [vmem:[#allocation5 + $0x1a8] sm:$0xff]
    %v109 = vld [vmem:[#allocation5 + $0x1b0] sm:$0xff]
    %v110 = vld [vmem:[#allocation5 + $0x1b8] sm:$0xff]
    %v111 = vld [vmem:[#allocation5 + $0x1c0] sm:$0xff]
    %v112 = vld [vmem:[#allocation5 + $0x1c8] sm:$0xff]
    %v113 = vld [vmem:[#allocation5 + $0x1d0] sm:$0xff]
    %v114 = vld [vmem:[#allocation5 + $0x1d8] sm:$0xff]
    %v115 = vld [vmem:[#allocation5 + $0x1e0] sm:$0xff]
    %v116 = vld [vmem:[#allocation5 + $0x1e8] sm:$0xff]
    %v117 = vld [vmem:[#allocation5 + $0x1f0] sm:$0xff]
    %v118 = vld [vmem:[#allocation5 + $0x1f8] sm:$0xff]
    %v119 = vld [vmem:[#allocation5 + $0x200] sm:$0xff]
    %v120 = vld [vmem:[#allocation5 + $0x208] sm:$0xff]
    %v121 = vld [vmem:[#allocation5 + $0x210] sm:$0xff]
    %v122 = vld [vmem:[#allocation5 + $0x218] sm:$0xff]
    %v123 = vld [vmem:[#allocation5 + $0x220] sm:$0xff]
    %v124 = vld [vmem:[#allocation5 + $0x228] sm:$0xff]
    %v125 = vld [vmem:[#allocation5 + $0x230] sm:$0xff]
    %v126 = vld [vmem:[#allocation5 + $0x238] sm:$0xff]
    %v127 = vld [vmem:[#allocation5 + $0x240] sm:$0xff]
    %v128 = vld [vmem:[#allocation5 + $0x248] sm:$0xff]
    %v129 = vld [vmem:[#allocation5 + $0x250] sm:$0xff]
    %v130 = vld [vmem:[#allocation5 + $0x258] sm:$0xff]
    %v131 = vld [vmem:[#allocation5 + $0x260] sm:$0xff]
    %v132 = vld [vmem:[#allocation5 + $0x268] sm:$0xff]
    %v133 = vld [vmem:[#allocation5 + $0x270] sm:$0xff]
    %v134 = vld [vmem:[#allocation5 + $0x278] sm:$0xff]
    %v135 = vld [vmem:[#allocation5 + $0x280] sm:$0xff]
    %v136 = vld [vmem:[#allocation5 + $0x288] sm:$0xff]
    %v137 = vld [vmem:[#allocation5 + $0x290] sm:$0xff]
    %v138 = vld [vmem:[#allocation5 + $0x298] sm:$0xff]
    %v139 = vld [vmem:[#allocation5 + $0x2a0] sm:$0xff]
    %v140 = vld [vmem:[#allocation5 + $0x2a8] sm:$0xff]
    %v141 = vld [vmem:[#allocation5 + $0x2b0] sm:$0xff]
    %v142 = vld [vmem:[#allocation5 + $0x2b8] sm:$0xff]
    %v143 = vld [vmem:[#allocation5 + $0x2c0] sm:$0xff]
    %v144 = vld [vmem:[#allocation5 + $0x2c8] sm:$0xff]
    %v145 = vld [vmem:[#allocation5 + $0x2d0] sm:$0xff]
    %v146 = vld [vmem:[#allocation5 + $0x2d8] sm:$0xff]
    %v147 = vld [vmem:[#allocation5 + $0x2e0] sm:$0xff]
    %v148 = vld [vmem:[#allocation5 + $0x2e8] sm:$0xff]
    %v149 = vld [vmem:[#allocation5 + $0x2f0] sm:$0xff]
    %v150 = vld [vmem:[#allocation5 + $0x2f8] sm:$0xff]
    %v151 = vld [vmem:[#allocation5 + $0x300] sm:$0xff]
    %v152 = vld [vmem:[#allocation5 + $0x308] sm:$0xff]
    %v153 = vld [vmem:[#allocation5 + $0x310] sm:$0xff]
    %v154 = vld [vmem:[#allocation5 + $0x318] sm:$0xff]
    %v155 = vld [vmem:[#allocation5 + $0x320] sm:$0xff]
    %v156 = vld [vmem:[#allocation5 + $0x328] sm:$0xff]
    %v157 = vld [vmem:[#allocation5 + $0x330] sm:$0xff]
    %v158 = vld [vmem:[#allocation5 + $0x338] sm:$0xff]
    %v159 = vld [vmem:[#allocation5 + $0x340] sm:$0xff]
    %v160 = vld [vmem:[#allocation5 + $0x348] sm:$0xff]
    %v161 = vld [vmem:[#allocation5 + $0x350] sm:$0xff]
    %v162 = vld [vmem:[#allocation5 + $0x358] sm:$0xff]
    %v163 = vld [vmem:[#allocation5 + $0x360] sm:$0xff]
    %v164 = vld [vmem:[#allocation5 + $0x368] sm:$0xff]
    %v165 = vld [vmem:[#allocation5 + $0x370] sm:$0xff]
    %v166 = vld [vmem:[#allocation5 + $0x378] sm:$0xff]
    %v167 = vld [vmem:[#allocation5 + $0x380] sm:$0xff]
    %v168 = vld [vmem:[#allocation5 + $0x388] sm:$0xff]
    %v169 = vld [vmem:[#allocation5 + $0x390] sm:$0xff]
    %v170 = vld [vmem:[#allocation5 + $0x398] sm:$0xff]
    %v171 = vld [vmem:[#allocation5 + $0x3a0] sm:$0xff]
    %v172 = vld [vmem:[#allocation5 + $0x3a8] sm:$0xff]
    %v173 = vld [vmem:[#allocation5 + $0x3b0] sm:$0xff]
    %v174 = vld [vmem:[#allocation5 + $0x3b8] sm:$0xff]
    %v175 = vld [vmem:[#allocation5 + $0x3c0] sm:$0xff]
    %v176 = vld [vmem:[#allocation5 + $0x3c8] sm:$0xff]
    %v177 = vld [vmem:[#allocation5 + $0x3d0] sm:$0xff]
    %v178 = vld [vmem:[#allocation5 + $0x3d8] sm:$0xff]
    %v179 = vld [vmem:[#allocation5 + $0x3e0] sm:$0xff]
    %v180 = vld [vmem:[#allocation5 + $0x3e8] sm:$0xff]
    %v181 = vld [vmem:[#allocation5 + $0x3f0] sm:$0xff]
    %v182 = vld [vmem:[#allocation5 + $0x3f8] sm:$0xff]
    %v183 = vld [vmem:[#allocation5 + $0x400] sm:$0xff]
    %v184 = vld [vmem:[#allocation5 + $0x408] sm:$0xff]
    %v185 = vld [vmem:[#allocation5 + $0x410] sm:$0xff]
    %v186 = vld [vmem:[#allocation5 + $0x418] sm:$0xff]
    %v187 = vld [vmem:[#allocation5 + $0x420] sm:$0xff]
    %v188 = vld [vmem:[#allocation5 + $0x428] sm:$0xff]
    %v189 = vld [vmem:[#allocation5 + $0x430] sm:$0xff]
    %v190 = vld [vmem:[#allocation5 + $0x438] sm:$0xff]
    %v191 = vld [vmem:[#allocation5 + $0x440] sm:$0xff]
    %v192 = vld [vmem:[#allocation5 + $0x448] sm:$0xff]
    %v193 = vld [vmem:[#allocation5 + $0x450] sm:$0xff]
    %v194 = vld [vmem:[#allocation5 + $0x458] sm:$0xff]
    %v195 = vld [vmem:[#allocation5 + $0x460] sm:$0xff]
    %v196 = vld [vmem:[#allocation5 + $0x468] sm:$0xff]
    %v197 = vld [vmem:[#allocation5 + $0x470] sm:$0xff]
    %v198 = vld [vmem:[#allocation5 + $0x478] sm:$0xff]
    %v199 = vld [vmem:[#allocation5 + $0x480] sm:$0xff]
    %v200 = vld [vmem:[#allocation5 + $0x488] sm:$0xff]
    %v201 = vld [vmem:[#allocation5 + $0x490] sm:$0xff]
    %v202 = vld [vmem:[#allocation5 + $0x498] sm:$0xff]
    %v203 = vld [vmem:[#allocation5 + $0x4a0] sm:$0xff]
    %v204 = vld [vmem:[#allocation5 + $0x4a8] sm:$0xff]
    %v205 = vld [vmem:[#allocation5 + $0x4b0] sm:$0xff]
    %v206 = vld [vmem:[#allocation5 + $0x4b8] sm:$0xff]
    %v207 = vld [vmem:[#allocation5 + $0x4c0] sm:$0xff]
    %v208 = vld [vmem:[#allocation5 + $0x4c8] sm:$0xff]
    %v209 = vld [vmem:[#allocation5 + $0x4d0] sm:$0xff]
    %v210 = vld [vmem:[#allocation5 + $0x4d8] sm:$0xff]
    %v211 = vld [vmem:[#allocation5 + $0x4e0] sm:$0xff]
    %v212 = vld [vmem:[#allocation5 + $0x4e8] sm:$0xff]
    %v213 = vld [vmem:[#allocation5 + $0x4f0] sm:$0xff]
    %v214 = vld [vmem:[#allocation5 + $0x4f8] sm:$0xff]
    %v215 = vld [vmem:[#allocation5 + $0x500] sm:$0xff]
    %v216 = vld [vmem:[#allocation5 + $0x508] sm:$0xff]
    %v217 = vld [vmem:[#allocation5 + $0x510] sm:$0xff]
    %v218 = vld [vmem:[#allocation5 + $0x518] sm:$0xff]
    %v219 = vld [vmem:[#allocation5 + $0x520] sm:$0xff]
    %v220 = vld [vmem:[#allocation5 + $0x528] sm:$0xff]
    %v221 = vld [vmem:[#allocation5 + $0x530] sm:$0xff]
    %v222 = vld [vmem:[#allocation5 + $0x538] sm:$0xff]
    %v223 = vld [vmem:[#allocation5 + $0x540] sm:$0xff]
    %v224 = vld [vmem:[#allocation5 + $0x548] sm:$0xff]
    %v225 = vld [vmem:[#allocation5 + $0x550] sm:$0xff]
    %v226 = vld [vmem:[#allocation5 + $0x558] sm:$0xff]
    %v227 = vld [vmem:[#allocation5 + $0x560] sm:$0xff]
    %v228 = vld [vmem:[#allocation5 + $0x568] sm:$0xff]
    %v229 = vld [vmem:[#allocation5 + $0x570] sm:$0xff]
    %v230 = vld [vmem:[#allocation5 + $0x578] sm:$0xff]
    %v231 = vld [vmem:[#allocation5 + $0x580] sm:$0xff]
    %v232 = vld [vmem:[#allocation5 + $0x588] sm:$0xff]
    %v233 = vld [vmem:[#allocation5 + $0x590] sm:$0xff]
    %v234 = vld [vmem:[#allocation5 + $0x598] sm:$0xff]
    %v235 = vld [vmem:[#allocation5 + $0x5a0] sm:$0xff]
    %v236 = vld [vmem:[#allocation5 + $0x5a8] sm:$0xff]
    %v237 = vld [vmem:[#allocation5 + $0x5b0] sm:$0xff]
    %v238 = vld [vmem:[#allocation5 + $0x5b8] sm:$0xff]
    %v239 = vld [vmem:[#allocation5 + $0x5c0] sm:$0xff]
    %v240 = vld [vmem:[#allocation5 + $0x5c8] sm:$0xff]
    %v241 = vld [vmem:[#allocation5 + $0x5d0] sm:$0xff]
    %v242 = vld [vmem:[#allocation5 + $0x5d8] sm:$0xff]
    %v243 = vld [vmem:[#allocation5 + $0x5e0] sm:$0xff]
    %v244 = vld [vmem:[#allocation5 + $0x5e8] sm:$0xff]
    %v245 = vld [vmem:[#allocation5 + $0x5f0] sm:$0xff]
    %v246 = vld [vmem:[#allocation5 + $0x5f8] sm:$0xff]
    %v247 = vld [vmem:[#allocation5 + $0x600] sm:$0xff]
    %v248 = vld [vmem:[#allocation5 + $0x608] sm:$0xff]
    %v249 = vld [vmem:[#allocation5 + $0x610] sm:$0xff]
    %v250 = vld [vmem:[#allocation5 + $0x618] sm:$0xff]
    %v251 = vld [vmem:[#allocation5 + $0x620] sm:$0xff]
    %v252 = vld [vmem:[#allocation5 + $0x628] sm:$0xff]
    %v253 = vld [vmem:[#allocation5 + $0x630] sm:$0xff]
    %v254 = vld [vmem:[#allocation5 + $0x638] sm:$0xff]
    %v255 = vld [vmem:[#allocation5 + $0x640] sm:$0xff]
    %v256 = vld [vmem:[#allocation5 + $0x648] sm:$0xff]
    %v257 = vld [vmem:[#allocation5 + $0x650] sm:$0xff]
    %v258 = vld [vmem:[#allocation5 + $0x658] sm:$0xff]
    %v259 = vld [vmem:[#allocation5 + $0x660] sm:$0xff]
    %v260 = vld [vmem:[#allocation5 + $0x668] sm:$0xff]
    %v261 = vld [vmem:[#allocation5 + $0x670] sm:$0xff]
    %v262 = vld [vmem:[#allocation5 + $0x678] sm:$0xff]
    %v263 = vld [vmem:[#allocation5 + $0x680] sm:$0xff]
    %v264 = vld [vmem:[#allocation5 + $0x688] sm:$0xff]
    %v265 = vld [vmem:[#allocation5 + $0x690] sm:$0xff]
    %v266 = vld [vmem:[#allocation5 + $0x698] sm:$0xff]
    %v267 = vld [vmem:[#allocation5 + $0x6a0] sm:$0xff]
    %v268 = vld [vmem:[#allocation5 + $0x6a8] sm:$0xff]
    %v269 = vld [vmem:[#allocation5 + $0x6b0] sm:$0xff]
    %v270 = vld [vmem:[#allocation5 + $0x6b8] sm:$0xff]
    %v271 = vld [vmem:[#allocation5 + $0x6c0] sm:$0xff]
    %v272 = vld [vmem:[#allocation5 + $0x6c8] sm:$0xff]
    %v273 = vld [vmem:[#allocation5 + $0x6d0] sm:$0xff]
    %v274 = vld [vmem:[#allocation5 + $0x6d8] sm:$0xff]
    %v275 = vld [vmem:[#allocation5 + $0x6e0] sm:$0xff]
    %v276 = vld [vmem:[#allocation5 + $0x6e8] sm:$0xff]
    %v277 = vld [vmem:[#allocation5 + $0x6f0] sm:$0xff]
    %v278 = vld [vmem:[#allocation5 + $0x6f8] sm:$0xff]
    %v279 = vld [vmem:[#allocation5 + $0x700] sm:$0xff]
    %v280 = vld [vmem:[#allocation5 + $0x708] sm:$0xff]
    %v281 = vld [vmem:[#allocation5 + $0x710] sm:$0xff]
    %v282 = vld [vmem:[#allocation5 + $0x718] sm:$0xff]
    %v283 = vld [vmem:[#allocation5 + $0x720] sm:$0xff]
    %v284 = vld [vmem:[#allocation5 + $0x728] sm:$0xff]
    %v285 = vld [vmem:[#allocation5 + $0x730] sm:$0xff]
    %v286 = vld [vmem:[#allocation5 + $0x738] sm:$0xff]
    %v287 = vld [vmem:[#allocation5 + $0x740] sm:$0xff]
    %v288 = vld [vmem:[#allocation5 + $0x748] sm:$0xff]
    %v289 = vld [vmem:[#allocation5 + $0x750] sm:$0xff]
    %v290 = vld [vmem:[#allocation5 + $0x758] sm:$0xff]
    %v291 = vld [vmem:[#allocation5 + $0x760] sm:$0xff]
    %v292 = vld [vmem:[#allocation5 + $0x768] sm:$0xff]
    %v293 = vld [vmem:[#allocation5 + $0x770] sm:$0xff]
    %v294 = vld [vmem:[#allocation5 + $0x778] sm:$0xff]
    %v295 = vld [vmem:[#allocation5 + $0x780] sm:$0xff]
    %v296 = vld [vmem:[#allocation5 + $0x788] sm:$0xff]
    %v297 = vld [vmem:[#allocation5 + $0x790] sm:$0xff]
    %v298 = vld [vmem:[#allocation5 + $0x798] sm:$0xff]
    %v299 = vld [vmem:[#allocation5 + $0x7a0] sm:$0xff]
    %v300 = vld [vmem:[#allocation5 + $0x7a8] sm:$0xff]
    %v301 = vld [vmem:[#allocation5 + $0x7b0] sm:$0xff]
    %v302 = vld [vmem:[#allocation5 + $0x7b8] sm:$0xff]
    %v303 = vld [vmem:[#allocation5 + $0x7c0] sm:$0xff]
    %v304 = vld [vmem:[#allocation5 + $0x7c8] sm:$0xff]
    %v305 = vld [vmem:[#allocation5 + $0x7d0] sm:$0xff]
    %v306 = vld [vmem:[#allocation5 + $0x7d8] sm:$0xff]
    %v307 = vld [vmem:[#allocation5 + $0x7e0] sm:$0xff]
    %v308 = vld [vmem:[#allocation5 + $0x7e8] sm:$0xff]
    %v309 = vld [vmem:[#allocation5 + $0x7f0] sm:$0xff]
    %v310 = vld [vmem:[#allocation5 + $0x7f8] sm:$0xff]
    %v311 = vld [vmem:[#allocation2] sm:$0xff]
    %v312 = vld [vmem:[#allocation2 + $0x8] sm:$0xff]
    %v315 = vcombine.high %v311, %v311
    %v317 = vunpack.c.l.s4 1983009808
    %v318 = vunpack.c.0.s8 %v317
    %v319 = vlaneseq
    %v320 = vshrl.u32 %v319, 7
    %v321 = vsub.s32 %v318, %v320
    %v322 = vrot.slane %v311, %v321
    %v324 = vunpack.c.l.s4 1983009808
    %v325 = vunpack.c.0.s8 %v324
    %v326 = vlaneseq
    %v327 = vshrl.u32 %v326, 7
    %v328 = vsub.s32 %v325, %v327
    %v329 = vrot.slane %v315, %v328
    %v330 = vcombine.high %v322, %v322
    %v331 = vcombine.high %v329, %v329
    %v332 = vcombine.high %v312, %v312
    %v334 = vunpack.c.l.s4 1983009808
    %v335 = vunpack.c.0.s8 %v334
    %v336 = vlaneseq
    %v337 = vshrl.u32 %v336, 7
    %v338 = vsub.s32 %v335, %v337
    %v339 = vrot.slane %v312, %v338
    %v341 = vunpack.c.l.s4 1983009808
    %v342 = vunpack.c.0.s8 %v341
    %v343 = vlaneseq
    %v344 = vshrl.u32 %v343, 7
    %v345 = vsub.s32 %v342, %v344
    %v346 = vrot.slane %v332, %v345
    %v347 = vcombine.high %v339, %v339
    %v348 = vcombine.high %v346, %v346
    %v357 = vpack.c.bf16 %v322, %v322
    %v358 = vpack.c.bf16 %v330, %v330
    %v359 = vpack.c.bf16 %v329, %v329
    %v360 = vpack.c.bf16 %v331, %v331
    %v361 = vpack.c.bf16 %v339, %v339
    %v362 = vpack.c.bf16 %v347, %v347
    %v363 = vpack.c.bf16 %v346, %v346
    %v364 = vpack.c.bf16 %v348, %v348
    %v621 = vunpack.c.l.b16 %v55
    %v622 = vunpack.c.h.b16 %v55
    %v623 = vunpack.c.l.b16 %v56
    %v624 = vunpack.c.h.b16 %v56
    %v625 = vunpack.c.l.b16 %v57
    %v626 = vunpack.c.h.b16 %v57
    %v627 = vunpack.c.l.b16 %v58
    %v628 = vunpack.c.h.b16 %v58
    %v629 = vunpack.c.l.b16 %v59
    %v630 = vunpack.c.h.b16 %v59
    %v631 = vunpack.c.l.b16 %v60
    %v632 = vunpack.c.h.b16 %v60
    %v633 = vunpack.c.l.b16 %v61
    %v634 = vunpack.c.h.b16 %v61
    %v635 = vunpack.c.l.b16 %v62
    %v636 = vunpack.c.h.b16 %v62
    %v637 = vunpack.c.l.b16 %v63
    %v638 = vunpack.c.h.b16 %v63
    %v639 = vunpack.c.l.b16 %v64
    %v640 = vunpack.c.h.b16 %v64
    %v641 = vunpack.c.l.b16 %v65
    %v642 = vunpack.c.h.b16 %v65
    %v643 = vunpack.c.l.b16 %v66
    %v644 = vunpack.c.h.b16 %v66
    %v645 = vunpack.c.l.b16 %v67
    %v646 = vunpack.c.h.b16 %v67
    %v647 = vunpack.c.l.b16 %v68
    %v648 = vunpack.c.h.b16 %v68
    %v649 = vunpack.c.l.b16 %v69
    %v650 = vunpack.c.h.b16 %v69
    %v651 = vunpack.c.l.b16 %v70
    %v652 = vunpack.c.h.b16 %v70
    %v653 = vunpack.c.l.b16 %v71
    %v654 = vunpack.c.h.b16 %v71
    %v655 = vunpack.c.l.b16 %v72
    %v656 = vunpack.c.h.b16 %v72
    %v657 = vunpack.c.l.b16 %v73
    %v658 = vunpack.c.h.b16 %v73
    %v659 = vunpack.c.l.b16 %v74
    %v660 = vunpack.c.h.b16 %v74
    %v661 = vunpack.c.l.b16 %v75
    %v662 = vunpack.c.h.b16 %v75
    %v663 = vunpack.c.l.b16 %v76
    %v664 = vunpack.c.h.b16 %v76
    %v665 = vunpack.c.l.b16 %v77
    %v666 = vunpack.c.h.b16 %v77
    %v667 = vunpack.c.l.b16 %v78
    %v668 = vunpack.c.h.b16 %v78
    %v669 = vunpack.c.l.b16 %v79
    %v670 = vunpack.c.h.b16 %v79
    %v671 = vunpack.c.l.b16 %v80
    %v672 = vunpack.c.h.b16 %v80
    %v673 = vunpack.c.l.b16 %v81
    %v674 = vunpack.c.h.b16 %v81
    %v675 = vunpack.c.l.b16 %v82
    %v676 = vunpack.c.h.b16 %v82
    %v677 = vunpack.c.l.b16 %v83
    %v678 = vunpack.c.h.b16 %v83
    %v679 = vunpack.c.l.b16 %v84
    %v680 = vunpack.c.h.b16 %v84
    %v681 = vunpack.c.l.b16 %v85
    %v682 = vunpack.c.h.b16 %v85
    %v683 = vunpack.c.l.b16 %v86
    %v684 = vunpack.c.h.b16 %v86
    %v685 = vunpack.c.l.b16 %v87
    %v686 = vunpack.c.h.b16 %v87
    %v687 = vunpack.c.l.b16 %v88
    %v688 = vunpack.c.h.b16 %v88
    %v689 = vunpack.c.l.b16 %v89
    %v690 = vunpack.c.h.b16 %v89
    %v691 = vunpack.c.l.b16 %v90
    %v692 = vunpack.c.h.b16 %v90
    %v693 = vunpack.c.l.b16 %v91
    %v694 = vunpack.c.h.b16 %v91
    %v695 = vunpack.c.l.b16 %v92
    %v696 = vunpack.c.h.b16 %v92
    %v697 = vunpack.c.l.b16 %v93
    %v698 = vunpack.c.h.b16 %v93
    %v699 = vunpack.c.l.b16 %v94
    %v700 = vunpack.c.h.b16 %v94
    %v701 = vunpack.c.l.b16 %v95
    %v702 = vunpack.c.h.b16 %v95
    %v703 = vunpack.c.l.b16 %v96
    %v704 = vunpack.c.h.b16 %v96
    %v705 = vunpack.c.l.b16 %v97
    %v706 = vunpack.c.h.b16 %v97
    %v707 = vunpack.c.l.b16 %v98
    %v708 = vunpack.c.h.b16 %v98
    %v709 = vunpack.c.l.b16 %v99
    %v710 = vunpack.c.h.b16 %v99
    %v711 = vunpack.c.l.b16 %v100
    %v712 = vunpack.c.h.b16 %v100
    %v713 = vunpack.c.l.b16 %v101
    %v714 = vunpack.c.h.b16 %v101
    %v715 = vunpack.c.l.b16 %v102
    %v716 = vunpack.c.h.b16 %v102
    %v717 = vunpack.c.l.b16 %v103
    %v718 = vunpack.c.h.b16 %v103
    %v719 = vunpack.c.l.b16 %v104
    %v720 = vunpack.c.h.b16 %v104
    %v721 = vunpack.c.l.b16 %v105
    %v722 = vunpack.c.h.b16 %v105
    %v723 = vunpack.c.l.b16 %v106
    %v724 = vunpack.c.h.b16 %v106
    %v725 = vunpack.c.l.b16 %v107
    %v726 = vunpack.c.h.b16 %v107
    %v727 = vunpack.c.l.b16 %v108
    %v728 = vunpack.c.h.b16 %v108
    %v729 = vunpack.c.l.b16 %v109
    %v730 = vunpack.c.h.b16 %v109
    %v731 = vunpack.c.l.b16 %v110
    %v732 = vunpack.c.h.b16 %v110
    %v733 = vunpack.c.l.b16 %v111
    %v734 = vunpack.c.h.b16 %v111
    %v735 = vunpack.c.l.b16 %v112
    %v736 = vunpack.c.h.b16 %v112
    %v737 = vunpack.c.l.b16 %v113
    %v738 = vunpack.c.h.b16 %v113
    %v739 = vunpack.c.l.b16 %v114
    %v740 = vunpack.c.h.b16 %v114
    %v741 = vunpack.c.l.b16 %v115
    %v742 = vunpack.c.h.b16 %v115
    %v743 = vunpack.c.l.b16 %v116
    %v744 = vunpack.c.h.b16 %v116
    %v745 = vunpack.c.l.b16 %v117
    %v746 = vunpack.c.h.b16 %v117
    %v747 = vunpack.c.l.b16 %v118
    %v748 = vunpack.c.h.b16 %v118
    %v749 = vunpack.c.l.b16 %v119
    %v750 = vunpack.c.h.b16 %v119
    %v751 = vunpack.c.l.b16 %v120
    %v752 = vunpack.c.h.b16 %v120
    %v753 = vunpack.c.l.b16 %v121
    %v754 = vunpack.c.h.b16 %v121
    %v755 = vunpack.c.l.b16 %v122
    %v756 = vunpack.c.h.b16 %v122
    %v757 = vunpack.c.l.b16 %v123
    %v758 = vunpack.c.h.b16 %v123
    %v759 = vunpack.c.l.b16 %v124
    %v760 = vunpack.c.h.b16 %v124
    %v761 = vunpack.c.l.b16 %v125
    %v762 = vunpack.c.h.b16 %v125
    %v763 = vunpack.c.l.b16 %v126
    %v764 = vunpack.c.h.b16 %v126
    %v765 = vunpack.c.l.b16 %v127
    %v766 = vunpack.c.h.b16 %v127
    %v767 = vunpack.c.l.b16 %v128
    %v768 = vunpack.c.h.b16 %v128
    %v769 = vunpack.c.l.b16 %v129
    %v770 = vunpack.c.h.b16 %v129
    %v771 = vunpack.c.l.b16 %v130
    %v772 = vunpack.c.h.b16 %v130
    %v773 = vunpack.c.l.b16 %v131
    %v774 = vunpack.c.h.b16 %v131
    %v775 = vunpack.c.l.b16 %v132
    %v776 = vunpack.c.h.b16 %v132
    %v777 = vunpack.c.l.b16 %v133
    %v778 = vunpack.c.h.b16 %v133
    %v779 = vunpack.c.l.b16 %v134
    %v780 = vunpack.c.h.b16 %v134
    %v781 = vunpack.c.l.b16 %v135
    %v782 = vunpack.c.h.b16 %v135
    %v783 = vunpack.c.l.b16 %v136
    %v784 = vunpack.c.h.b16 %v136
    %v785 = vunpack.c.l.b16 %v137
    %v786 = vunpack.c.h.b16 %v137
    %v787 = vunpack.c.l.b16 %v138
    %v788 = vunpack.c.h.b16 %v138
    %v789 = vunpack.c.l.b16 %v139
    %v790 = vunpack.c.h.b16 %v139
    %v791 = vunpack.c.l.b16 %v140
    %v792 = vunpack.c.h.b16 %v140
    %v793 = vunpack.c.l.b16 %v141
    %v794 = vunpack.c.h.b16 %v141
    %v795 = vunpack.c.l.b16 %v142
    %v796 = vunpack.c.h.b16 %v142
    %v797 = vunpack.c.l.b16 %v143
    %v798 = vunpack.c.h.b16 %v143
    %v799 = vunpack.c.l.b16 %v144
    %v800 = vunpack.c.h.b16 %v144
    %v801 = vunpack.c.l.b16 %v145
    %v802 = vunpack.c.h.b16 %v145
    %v803 = vunpack.c.l.b16 %v146
    %v804 = vunpack.c.h.b16 %v146
    %v805 = vunpack.c.l.b16 %v147
    %v806 = vunpack.c.h.b16 %v147
    %v807 = vunpack.c.l.b16 %v148
    %v808 = vunpack.c.h.b16 %v148
    %v809 = vunpack.c.l.b16 %v149
    %v810 = vunpack.c.h.b16 %v149
    %v811 = vunpack.c.l.b16 %v150
    %v812 = vunpack.c.h.b16 %v150
    %v813 = vunpack.c.l.b16 %v151
    %v814 = vunpack.c.h.b16 %v151
    %v815 = vunpack.c.l.b16 %v152
    %v816 = vunpack.c.h.b16 %v152
    %v817 = vunpack.c.l.b16 %v153
    %v818 = vunpack.c.h.b16 %v153
    %v819 = vunpack.c.l.b16 %v154
    %v820 = vunpack.c.h.b16 %v154
    %v821 = vunpack.c.l.b16 %v155
    %v822 = vunpack.c.h.b16 %v155
    %v823 = vunpack.c.l.b16 %v156
    %v824 = vunpack.c.h.b16 %v156
    %v825 = vunpack.c.l.b16 %v157
    %v826 = vunpack.c.h.b16 %v157
    %v827 = vunpack.c.l.b16 %v158
    %v828 = vunpack.c.h.b16 %v158
    %v829 = vunpack.c.l.b16 %v159
    %v830 = vunpack.c.h.b16 %v159
    %v831 = vunpack.c.l.b16 %v160
    %v832 = vunpack.c.h.b16 %v160
    %v833 = vunpack.c.l.b16 %v161
    %v834 = vunpack.c.h.b16 %v161
    %v835 = vunpack.c.l.b16 %v162
    %v836 = vunpack.c.h.b16 %v162
    %v837 = vunpack.c.l.b16 %v163
    %v838 = vunpack.c.h.b16 %v163
    %v839 = vunpack.c.l.b16 %v164
    %v840 = vunpack.c.h.b16 %v164
    %v841 = vunpack.c.l.b16 %v165
    %v842 = vunpack.c.h.b16 %v165
    %v843 = vunpack.c.l.b16 %v166
    %v844 = vunpack.c.h.b16 %v166
    %v845 = vunpack.c.l.b16 %v167
    %v846 = vunpack.c.h.b16 %v167
    %v847 = vunpack.c.l.b16 %v168
    %v848 = vunpack.c.h.b16 %v168
    %v849 = vunpack.c.l.b16 %v169
    %v850 = vunpack.c.h.b16 %v169
    %v851 = vunpack.c.l.b16 %v170
    %v852 = vunpack.c.h.b16 %v170
    %v853 = vunpack.c.l.b16 %v171
    %v854 = vunpack.c.h.b16 %v171
    %v855 = vunpack.c.l.b16 %v172
    %v856 = vunpack.c.h.b16 %v172
    %v857 = vunpack.c.l.b16 %v173
    %v858 = vunpack.c.h.b16 %v173
    %v859 = vunpack.c.l.b16 %v174
    %v860 = vunpack.c.h.b16 %v174
    %v861 = vunpack.c.l.b16 %v175
    %v862 = vunpack.c.h.b16 %v175
    %v863 = vunpack.c.l.b16 %v176
    %v864 = vunpack.c.h.b16 %v176
    %v865 = vunpack.c.l.b16 %v177
    %v866 = vunpack.c.h.b16 %v177
    %v867 = vunpack.c.l.b16 %v178
    %v868 = vunpack.c.h.b16 %v178
    %v869 = vunpack.c.l.b16 %v179
    %v870 = vunpack.c.h.b16 %v179
    %v871 = vunpack.c.l.b16 %v180
    %v872 = vunpack.c.h.b16 %v180
    %v873 = vunpack.c.l.b16 %v181
    %v874 = vunpack.c.h.b16 %v181
    %v875 = vunpack.c.l.b16 %v182
    %v876 = vunpack.c.h.b16 %v182
    %v877 = vunpack.c.l.b16 %v183
    %v878 = vunpack.c.h.b16 %v183
    %v879 = vunpack.c.l.b16 %v184
    %v880 = vunpack.c.h.b16 %v184
    %v881 = vunpack.c.l.b16 %v185
    %v882 = vunpack.c.h.b16 %v185
    %v883 = vunpack.c.l.b16 %v186
    %v884 = vunpack.c.h.b16 %v186
    %v885 = vunpack.c.l.b16 %v187
    %v886 = vunpack.c.h.b16 %v187
    %v887 = vunpack.c.l.b16 %v188
    %v888 = vunpack.c.h.b16 %v188
    %v889 = vunpack.c.l.b16 %v189
    %v890 = vunpack.c.h.b16 %v189
    %v891 = vunpack.c.l.b16 %v190
    %v892 = vunpack.c.h.b16 %v190
    %v893 = vunpack.c.l.b16 %v191
    %v894 = vunpack.c.h.b16 %v191
    %v895 = vunpack.c.l.b16 %v192
    %v896 = vunpack.c.h.b16 %v192
    %v897 = vunpack.c.l.b16 %v193
    %v898 = vunpack.c.h.b16 %v193
    %v899 = vunpack.c.l.b16 %v194
    %v900 = vunpack.c.h.b16 %v194
    %v901 = vunpack.c.l.b16 %v195
    %v902 = vunpack.c.h.b16 %v195
    %v903 = vunpack.c.l.b16 %v196
    %v904 = vunpack.c.h.b16 %v196
    %v905 = vunpack.c.l.b16 %v197
    %v906 = vunpack.c.h.b16 %v197
    %v907 = vunpack.c.l.b16 %v198
    %v908 = vunpack.c.h.b16 %v198
    %v909 = vunpack.c.l.b16 %v199
    %v910 = vunpack.c.h.b16 %v199
    %v911 = vunpack.c.l.b16 %v200
    %v912 = vunpack.c.h.b16 %v200
    %v913 = vunpack.c.l.b16 %v201
    %v914 = vunpack.c.h.b16 %v201
    %v915 = vunpack.c.l.b16 %v202
    %v916 = vunpack.c.h.b16 %v202
    %v917 = vunpack.c.l.b16 %v203
    %v918 = vunpack.c.h.b16 %v203
    %v919 = vunpack.c.l.b16 %v204
    %v920 = vunpack.c.h.b16 %v204
    %v921 = vunpack.c.l.b16 %v205
    %v922 = vunpack.c.h.b16 %v205
    %v923 = vunpack.c.l.b16 %v206
    %v924 = vunpack.c.h.b16 %v206
    %v925 = vunpack.c.l.b16 %v207
    %v926 = vunpack.c.h.b16 %v207
    %v927 = vunpack.c.l.b16 %v208
    %v928 = vunpack.c.h.b16 %v208
    %v929 = vunpack.c.l.b16 %v209
    %v930 = vunpack.c.h.b16 %v209
    %v931 = vunpack.c.l.b16 %v210
    %v932 = vunpack.c.h.b16 %v210
    %v933 = vunpack.c.l.b16 %v211
    %v934 = vunpack.c.h.b16 %v211
    %v935 = vunpack.c.l.b16 %v212
    %v936 = vunpack.c.h.b16 %v212
    %v937 = vunpack.c.l.b16 %v213
    %v938 = vunpack.c.h.b16 %v213
    %v939 = vunpack.c.l.b16 %v214
    %v940 = vunpack.c.h.b16 %v214
    %v941 = vunpack.c.l.b16 %v215
    %v942 = vunpack.c.h.b16 %v215
    %v943 = vunpack.c.l.b16 %v216
    %v944 = vunpack.c.h.b16 %v216
    %v945 = vunpack.c.l.b16 %v217
    %v946 = vunpack.c.h.b16 %v217
    %v947 = vunpack.c.l.b16 %v218
    %v948 = vunpack.c.h.b16 %v218
    %v949 = vunpack.c.l.b16 %v219
    %v950 = vunpack.c.h.b16 %v219
    %v951 = vunpack.c.l.b16 %v220
    %v952 = vunpack.c.h.b16 %v220
    %v953 = vunpack.c.l.b16 %v221
    %v954 = vunpack.c.h.b16 %v221
    %v955 = vunpack.c.l.b16 %v222
    %v956 = vunpack.c.h.b16 %v222
    %v957 = vunpack.c.l.b16 %v223
    %v958 = vunpack.c.h.b16 %v223
    %v959 = vunpack.c.l.b16 %v224
    %v960 = vunpack.c.h.b16 %v224
    %v961 = vunpack.c.l.b16 %v225
    %v962 = vunpack.c.h.b16 %v225
    %v963 = vunpack.c.l.b16 %v226
    %v964 = vunpack.c.h.b16 %v226
    %v965 = vunpack.c.l.b16 %v227
    %v966 = vunpack.c.h.b16 %v227
    %v967 = vunpack.c.l.b16 %v228
    %v968 = vunpack.c.h.b16 %v228
    %v969 = vunpack.c.l.b16 %v229
    %v970 = vunpack.c.h.b16 %v229
    %v971 = vunpack.c.l.b16 %v230
    %v972 = vunpack.c.h.b16 %v230
    %v973 = vunpack.c.l.b16 %v231
    %v974 = vunpack.c.h.b16 %v231
    %v975 = vunpack.c.l.b16 %v232
    %v976 = vunpack.c.h.b16 %v232
    %v977 = vunpack.c.l.b16 %v233
    %v978 = vunpack.c.h.b16 %v233
    %v979 = vunpack.c.l.b16 %v234
    %v980 = vunpack.c.h.b16 %v234
    %v981 = vunpack.c.l.b16 %v235
    %v982 = vunpack.c.h.b16 %v235
    %v983 = vunpack.c.l.b16 %v236
    %v984 = vunpack.c.h.b16 %v236
    %v985 = vunpack.c.l.b16 %v237
    %v986 = vunpack.c.h.b16 %v237
    %v987 = vunpack.c.l.b16 %v238
    %v988 = vunpack.c.h.b16 %v238
    %v989 = vunpack.c.l.b16 %v239
    %v990 = vunpack.c.h.b16 %v239
    %v991 = vunpack.c.l.b16 %v240
    %v992 = vunpack.c.h.b16 %v240
    %v993 = vunpack.c.l.b16 %v241
    %v994 = vunpack.c.h.b16 %v241
    %v995 = vunpack.c.l.b16 %v242
    %v996 = vunpack.c.h.b16 %v242
    %v997 = vunpack.c.l.b16 %v243
    %v998 = vunpack.c.h.b16 %v243
    %v999 = vunpack.c.l.b16 %v244
    %v1000 = vunpack.c.h.b16 %v244
    %v1001 = vunpack.c.l.b16 %v245
    %v1002 = vunpack.c.h.b16 %v245
    %v1003 = vunpack.c.l.b16 %v246
    %v1004 = vunpack.c.h.b16 %v246
    %v1005 = vunpack.c.l.b16 %v247
    %v1006 = vunpack.c.h.b16 %v247
    %v1007 = vunpack.c.l.b16 %v248
    %v1008 = vunpack.c.h.b16 %v248
    %v1009 = vunpack.c.l.b16 %v249
    %v1010 = vunpack.c.h.b16 %v249
    %v1011 = vunpack.c.l.b16 %v250
    %v1012 = vunpack.c.h.b16 %v250
    %v1013 = vunpack.c.l.b16 %v251
    %v1014 = vunpack.c.h.b16 %v251
    %v1015 = vunpack.c.l.b16 %v252
    %v1016 = vunpack.c.h.b16 %v252
    %v1017 = vunpack.c.l.b16 %v253
    %v1018 = vunpack.c.h.b16 %v253
    %v1019 = vunpack.c.l.b16 %v254
    %v1020 = vunpack.c.h.b16 %v254
    %v1021 = vunpack.c.l.b16 %v255
    %v1022 = vunpack.c.h.b16 %v255
    %v1023 = vunpack.c.l.b16 %v256
    %v1024 = vunpack.c.h.b16 %v256
    %v1025 = vunpack.c.l.b16 %v257
    %v1026 = vunpack.c.h.b16 %v257
    %v1027 = vunpack.c.l.b16 %v258
    %v1028 = vunpack.c.h.b16 %v258
    %v1029 = vunpack.c.l.b16 %v259
    %v1030 = vunpack.c.h.b16 %v259
    %v1031 = vunpack.c.l.b16 %v260
    %v1032 = vunpack.c.h.b16 %v260
    %v1033 = vunpack.c.l.b16 %v261
    %v1034 = vunpack.c.h.b16 %v261
    %v1035 = vunpack.c.l.b16 %v262
    %v1036 = vunpack.c.h.b16 %v262
    %v1037 = vunpack.c.l.b16 %v263
    %v1038 = vunpack.c.h.b16 %v263
    %v1039 = vunpack.c.l.b16 %v264
    %v1040 = vunpack.c.h.b16 %v264
    %v1041 = vunpack.c.l.b16 %v265
    %v1042 = vunpack.c.h.b16 %v265
    %v1043 = vunpack.c.l.b16 %v266
    %v1044 = vunpack.c.h.b16 %v266
    %v1045 = vunpack.c.l.b16 %v267
    %v1046 = vunpack.c.h.b16 %v267
    %v1047 = vunpack.c.l.b16 %v268
    %v1048 = vunpack.c.h.b16 %v268
    %v1049 = vunpack.c.l.b16 %v269
    %v1050 = vunpack.c.h.b16 %v269
    %v1051 = vunpack.c.l.b16 %v270
    %v1052 = vunpack.c.h.b16 %v270
    %v1053 = vunpack.c.l.b16 %v271
    %v1054 = vunpack.c.h.b16 %v271
    %v1055 = vunpack.c.l.b16 %v272
    %v1056 = vunpack.c.h.b16 %v272
    %v1057 = vunpack.c.l.b16 %v273
    %v1058 = vunpack.c.h.b16 %v273
    %v1059 = vunpack.c.l.b16 %v274
    %v1060 = vunpack.c.h.b16 %v274
    %v1061 = vunpack.c.l.b16 %v275
    %v1062 = vunpack.c.h.b16 %v275
    %v1063 = vunpack.c.l.b16 %v276
    %v1064 = vunpack.c.h.b16 %v276
    %v1065 = vunpack.c.l.b16 %v277
    %v1066 = vunpack.c.h.b16 %v277
    %v1067 = vunpack.c.l.b16 %v278
    %v1068 = vunpack.c.h.b16 %v278
    %v1069 = vunpack.c.l.b16 %v279
    %v1070 = vunpack.c.h.b16 %v279
    %v1071 = vunpack.c.l.b16 %v280
    %v1072 = vunpack.c.h.b16 %v280
    %v1073 = vunpack.c.l.b16 %v281
    %v1074 = vunpack.c.h.b16 %v281
    %v1075 = vunpack.c.l.b16 %v282
    %v1076 = vunpack.c.h.b16 %v282
    %v1077 = vunpack.c.l.b16 %v283
    %v1078 = vunpack.c.h.b16 %v283
    %v1079 = vunpack.c.l.b16 %v284
    %v1080 = vunpack.c.h.b16 %v284
    %v1081 = vunpack.c.l.b16 %v285
    %v1082 = vunpack.c.h.b16 %v285
    %v1083 = vunpack.c.l.b16 %v286
    %v1084 = vunpack.c.h.b16 %v286
    %v1085 = vunpack.c.l.b16 %v287
    %v1086 = vunpack.c.h.b16 %v287
    %v1087 = vunpack.c.l.b16 %v288
    %v1088 = vunpack.c.h.b16 %v288
    %v1089 = vunpack.c.l.b16 %v289
    %v1090 = vunpack.c.h.b16 %v289
    %v1091 = vunpack.c.l.b16 %v290
    %v1092 = vunpack.c.h.b16 %v290
    %v1093 = vunpack.c.l.b16 %v291
    %v1094 = vunpack.c.h.b16 %v291
    %v1095 = vunpack.c.l.b16 %v292
    %v1096 = vunpack.c.h.b16 %v292
    %v1097 = vunpack.c.l.b16 %v293
    %v1098 = vunpack.c.h.b16 %v293
    %v1099 = vunpack.c.l.b16 %v294
    %v1100 = vunpack.c.h.b16 %v294
    %v1101 = vunpack.c.l.b16 %v295
    %v1102 = vunpack.c.h.b16 %v295
    %v1103 = vunpack.c.l.b16 %v296
    %v1104 = vunpack.c.h.b16 %v296
    %v1105 = vunpack.c.l.b16 %v297
    %v1106 = vunpack.c.h.b16 %v297
    %v1107 = vunpack.c.l.b16 %v298
    %v1108 = vunpack.c.h.b16 %v298
    %v1109 = vunpack.c.l.b16 %v299
    %v1110 = vunpack.c.h.b16 %v299
    %v1111 = vunpack.c.l.b16 %v300
    %v1112 = vunpack.c.h.b16 %v300
    %v1113 = vunpack.c.l.b16 %v301
    %v1114 = vunpack.c.h.b16 %v301
    %v1115 = vunpack.c.l.b16 %v302
    %v1116 = vunpack.c.h.b16 %v302
    %v1117 = vunpack.c.l.b16 %v303
    %v1118 = vunpack.c.h.b16 %v303
    %v1119 = vunpack.c.l.b16 %v304
    %v1120 = vunpack.c.h.b16 %v304
    %v1121 = vunpack.c.l.b16 %v305
    %v1122 = vunpack.c.h.b16 %v305
    %v1123 = vunpack.c.l.b16 %v306
    %v1124 = vunpack.c.h.b16 %v306
    %v1125 = vunpack.c.l.b16 %v307
    %v1126 = vunpack.c.h.b16 %v307
    %v1127 = vunpack.c.l.b16 %v308
    %v1128 = vunpack.c.h.b16 %v308
    %v1129 = vunpack.c.l.b16 %v309
    %v1130 = vunpack.c.h.b16 %v309
    %v1131 = vunpack.c.l.b16 %v310
    %v1132 = vunpack.c.h.b16 %v310
    %v1133 = vpack.c.b16 %v629, %v621
    %v1134 = vpack.c.b16 %v630, %v622
    %v1135 = vpack.c.b16 %v631, %v623
    %v1136 = vpack.c.b16 %v632, %v624
    %v1137 = vpack.c.b16 %v633, %v625
    %v1138 = vpack.c.b16 %v634, %v626
    %v1139 = vpack.c.b16 %v635, %v627
    %v1140 = vpack.c.b16 %v636, %v628
    %v1141 = vpack.c.b16 %v645, %v637
    %v1142 = vpack.c.b16 %v646, %v638
    %v1143 = vpack.c.b16 %v647, %v639
    %v1144 = vpack.c.b16 %v648, %v640
    %v1145 = vpack.c.b16 %v649, %v641
    %v1146 = vpack.c.b16 %v650, %v642
    %v1147 = vpack.c.b16 %v651, %v643
    %v1148 = vpack.c.b16 %v652, %v644
    %v1149 = vpack.c.b16 %v661, %v653
    %v1150 = vpack.c.b16 %v662, %v654
    %v1151 = vpack.c.b16 %v663, %v655
    %v1152 = vpack.c.b16 %v664, %v656
    %v1153 = vpack.c.b16 %v665, %v657
    %v1154 = vpack.c.b16 %v666, %v658
    %v1155 = vpack.c.b16 %v667, %v659
    %v1156 = vpack.c.b16 %v668, %v660
    %v1157 = vpack.c.b16 %v677, %v669
    %v1158 = vpack.c.b16 %v678, %v670
    %v1159 = vpack.c.b16 %v679, %v671
    %v1160 = vpack.c.b16 %v680, %v672
    %v1161 = vpack.c.b16 %v681, %v673
    %v1162 = vpack.c.b16 %v682, %v674
    %v1163 = vpack.c.b16 %v683, %v675
    %v1164 = vpack.c.b16 %v684, %v676
    %v1165 = vpack.c.b16 %v693, %v685
    %v1166 = vpack.c.b16 %v694, %v686
    %v1167 = vpack.c.b16 %v695, %v687
    %v1168 = vpack.c.b16 %v696, %v688
    %v1169 = vpack.c.b16 %v697, %v689
    %v1170 = vpack.c.b16 %v698, %v690
    %v1171 = vpack.c.b16 %v699, %v691
    %v1172 = vpack.c.b16 %v700, %v692
    %v1173 = vpack.c.b16 %v709, %v701
    %v1174 = vpack.c.b16 %v710, %v702
    %v1175 = vpack.c.b16 %v711, %v703
    %v1176 = vpack.c.b16 %v712, %v704
    %v1177 = vpack.c.b16 %v713, %v705
    %v1178 = vpack.c.b16 %v714, %v706
    %v1179 = vpack.c.b16 %v715, %v707
    %v1180 = vpack.c.b16 %v716, %v708
    %v1181 = vpack.c.b16 %v725, %v717
    %v1182 = vpack.c.b16 %v726, %v718
    %v1183 = vpack.c.b16 %v727, %v719
    %v1184 = vpack.c.b16 %v728, %v720
    %v1185 = vpack.c.b16 %v729, %v721
    %v1186 = vpack.c.b16 %v730, %v722
    %v1187 = vpack.c.b16 %v731, %v723
    %v1188 = vpack.c.b16 %v732, %v724
    %v1189 = vpack.c.b16 %v741, %v733
    %v1190 = vpack.c.b16 %v742, %v734
    %v1191 = vpack.c.b16 %v743, %v735
    %v1192 = vpack.c.b16 %v744, %v736
    %v1193 = vpack.c.b16 %v745, %v737
    %v1194 = vpack.c.b16 %v746, %v738
    %v1195 = vpack.c.b16 %v747, %v739
    %v1196 = vpack.c.b16 %v748, %v740
    %v1197 = vpack.c.b16 %v757, %v749
    %v1198 = vpack.c.b16 %v758, %v750
    %v1199 = vpack.c.b16 %v759, %v751
    %v1200 = vpack.c.b16 %v760, %v752
    %v1201 = vpack.c.b16 %v761, %v753
    %v1202 = vpack.c.b16 %v762, %v754
    %v1203 = vpack.c.b16 %v763, %v755
    %v1204 = vpack.c.b16 %v764, %v756
    %v1205 = vpack.c.b16 %v773, %v765
    %v1206 = vpack.c.b16 %v774, %v766
    %v1207 = vpack.c.b16 %v775, %v767
    %v1208 = vpack.c.b16 %v776, %v768
    %v1209 = vpack.c.b16 %v777, %v769
    %v1210 = vpack.c.b16 %v778, %v770
    %v1211 = vpack.c.b16 %v779, %v771
    %v1212 = vpack.c.b16 %v780, %v772
    %v1213 = vpack.c.b16 %v789, %v781
    %v1214 = vpack.c.b16 %v790, %v782
    %v1215 = vpack.c.b16 %v791, %v783
    %v1216 = vpack.c.b16 %v792, %v784
    %v1217 = vpack.c.b16 %v793, %v785
    %v1218 = vpack.c.b16 %v794, %v786
    %v1219 = vpack.c.b16 %v795, %v787
    %v1220 = vpack.c.b16 %v796, %v788
    %v1221 = vpack.c.b16 %v805, %v797
    %v1222 = vpack.c.b16 %v806, %v798
    %v1223 = vpack.c.b16 %v807, %v799
    %v1224 = vpack.c.b16 %v808, %v800
    %v1225 = vpack.c.b16 %v809, %v801
    %v1226 = vpack.c.b16 %v810, %v802
    %v1227 = vpack.c.b16 %v811, %v803
    %v1228 = vpack.c.b16 %v812, %v804
    %v1229 = vpack.c.b16 %v821, %v813
    %v1230 = vpack.c.b16 %v822, %v814
    %v1231 = vpack.c.b16 %v823, %v815
    %v1232 = vpack.c.b16 %v824, %v816
    %v1233 = vpack.c.b16 %v825, %v817
    %v1234 = vpack.c.b16 %v826, %v818
    %v1235 = vpack.c.b16 %v827, %v819
    %v1236 = vpack.c.b16 %v828, %v820
    %v1237 = vpack.c.b16 %v837, %v829
    %v1238 = vpack.c.b16 %v838, %v830
    %v1239 = vpack.c.b16 %v839, %v831
    %v1240 = vpack.c.b16 %v840, %v832
    %v1241 = vpack.c.b16 %v841, %v833
    %v1242 = vpack.c.b16 %v842, %v834
    %v1243 = vpack.c.b16 %v843, %v835
    %v1244 = vpack.c.b16 %v844, %v836
    %v1245 = vpack.c.b16 %v853, %v845
    %v1246 = vpack.c.b16 %v854, %v846
    %v1247 = vpack.c.b16 %v855, %v847
    %v1248 = vpack.c.b16 %v856, %v848
    %v1249 = vpack.c.b16 %v857, %v849
    %v1250 = vpack.c.b16 %v858, %v850
    %v1251 = vpack.c.b16 %v859, %v851
    %v1252 = vpack.c.b16 %v860, %v852
    %v1253 = vpack.c.b16 %v869, %v861
    %v1254 = vpack.c.b16 %v870, %v862
    %v1255 = vpack.c.b16 %v871, %v863
    %v1256 = vpack.c.b16 %v872, %v864
    %v1257 = vpack.c.b16 %v873, %v865
    %v1258 = vpack.c.b16 %v874, %v866
    %v1259 = vpack.c.b16 %v875, %v867
    %v1260 = vpack.c.b16 %v876, %v868
    %v1261 = vpack.c.b16 %v885, %v877
    %v1262 = vpack.c.b16 %v886, %v878
    %v1263 = vpack.c.b16 %v887, %v879
    %v1264 = vpack.c.b16 %v888, %v880
    %v1265 = vpack.c.b16 %v889, %v881
    %v1266 = vpack.c.b16 %v890, %v882
    %v1267 = vpack.c.b16 %v891, %v883
    %v1268 = vpack.c.b16 %v892, %v884
    %v1269 = vpack.c.b16 %v901, %v893
    %v1270 = vpack.c.b16 %v902, %v894
    %v1271 = vpack.c.b16 %v903, %v895
    %v1272 = vpack.c.b16 %v904, %v896
    %v1273 = vpack.c.b16 %v905, %v897
    %v1274 = vpack.c.b16 %v906, %v898
    %v1275 = vpack.c.b16 %v907, %v899
    %v1276 = vpack.c.b16 %v908, %v900
    %v1277 = vpack.c.b16 %v917, %v909
    %v1278 = vpack.c.b16 %v918, %v910
    %v1279 = vpack.c.b16 %v919, %v911
    %v1280 = vpack.c.b16 %v920, %v912
    %v1281 = vpack.c.b16 %v921, %v913
    %v1282 = vpack.c.b16 %v922, %v914
    %v1283 = vpack.c.b16 %v923, %v915
    %v1284 = vpack.c.b16 %v924, %v916
    %v1285 = vpack.c.b16 %v933, %v925
    %v1286 = vpack.c.b16 %v934, %v926
    %v1287 = vpack.c.b16 %v935, %v927
    %v1288 = vpack.c.b16 %v936, %v928
    %v1289 = vpack.c.b16 %v937, %v929
    %v1290 = vpack.c.b16 %v938, %v930
    %v1291 = vpack.c.b16 %v939, %v931
    %v1292 = vpack.c.b16 %v940, %v932
    %v1293 = vpack.c.b16 %v949, %v941
    %v1294 = vpack.c.b16 %v950, %v942
    %v1295 = vpack.c.b16 %v951, %v943
    %v1296 = vpack.c.b16 %v952, %v944
    %v1297 = vpack.c.b16 %v953, %v945
    %v1298 = vpack.c.b16 %v954, %v946
    %v1299 = vpack.c.b16 %v955, %v947
    %v1300 = vpack.c.b16 %v956, %v948
    %v1301 = vpack.c.b16 %v965, %v957
    %v1302 = vpack.c.b16 %v966, %v958
    %v1303 = vpack.c.b16 %v967, %v959
    %v1304 = vpack.c.b16 %v968, %v960
    %v1305 = vpack.c.b16 %v969, %v961
    %v1306 = vpack.c.b16 %v970, %v962
    %v1307 = vpack.c.b16 %v971, %v963
    %v1308 = vpack.c.b16 %v972, %v964
    %v1309 = vpack.c.b16 %v981, %v973
    %v1310 = vpack.c.b16 %v982, %v974
    %v1311 = vpack.c.b16 %v983, %v975
    %v1312 = vpack.c.b16 %v984, %v976
    %v1313 = vpack.c.b16 %v985, %v977
    %v1314 = vpack.c.b16 %v986, %v978
    %v1315 = vpack.c.b16 %v987, %v979
    %v1316 = vpack.c.b16 %v988, %v980
    %v1317 = vpack.c.b16 %v997, %v989
    %v1318 = vpack.c.b16 %v998, %v990
    %v1319 = vpack.c.b16 %v999, %v991
    %v1320 = vpack.c.b16 %v1000, %v992
    %v1321 = vpack.c.b16 %v1001, %v993
    %v1322 = vpack.c.b16 %v1002, %v994
    %v1323 = vpack.c.b16 %v1003, %v995
    %v1324 = vpack.c.b16 %v1004, %v996
    %v1325 = vpack.c.b16 %v1013, %v1005
    %v1326 = vpack.c.b16 %v1014, %v1006
    %v1327 = vpack.c.b16 %v1015, %v1007
    %v1328 = vpack.c.b16 %v1016, %v1008
    %v1329 = vpack.c.b16 %v1017, %v1009
    %v1330 = vpack.c.b16 %v1018, %v1010
    %v1331 = vpack.c.b16 %v1019, %v1011
    %v1332 = vpack.c.b16 %v1020, %v1012
    %v1333 = vpack.c.b16 %v1029, %v1021
    %v1334 = vpack.c.b16 %v1030, %v1022
    %v1335 = vpack.c.b16 %v1031, %v1023
    %v1336 = vpack.c.b16 %v1032, %v1024
    %v1337 = vpack.c.b16 %v1033, %v1025
    %v1338 = vpack.c.b16 %v1034, %v1026
    %v1339 = vpack.c.b16 %v1035, %v1027
    %v1340 = vpack.c.b16 %v1036, %v1028
    %v1341 = vpack.c.b16 %v1045, %v1037
    %v1342 = vpack.c.b16 %v1046, %v1038
    %v1343 = vpack.c.b16 %v1047, %v1039
    %v1344 = vpack.c.b16 %v1048, %v1040
    %v1345 = vpack.c.b16 %v1049, %v1041
    %v1346 = vpack.c.b16 %v1050, %v1042
    %v1347 = vpack.c.b16 %v1051, %v1043
    %v1348 = vpack.c.b16 %v1052, %v1044
    %v1349 = vpack.c.b16 %v1061, %v1053
    %v1350 = vpack.c.b16 %v1062, %v1054
    %v1351 = vpack.c.b16 %v1063, %v1055
    %v1352 = vpack.c.b16 %v1064, %v1056
    %v1353 = vpack.c.b16 %v1065, %v1057
    %v1354 = vpack.c.b16 %v1066, %v1058
    %v1355 = vpack.c.b16 %v1067, %v1059
    %v1356 = vpack.c.b16 %v1068, %v1060
    %v1357 = vpack.c.b16 %v1077, %v1069
    %v1358 = vpack.c.b16 %v1078, %v1070
    %v1359 = vpack.c.b16 %v1079, %v1071
    %v1360 = vpack.c.b16 %v1080, %v1072
    %v1361 = vpack.c.b16 %v1081, %v1073
    %v1362 = vpack.c.b16 %v1082, %v1074
    %v1363 = vpack.c.b16 %v1083, %v1075
    %v1364 = vpack.c.b16 %v1084, %v1076
    %v1365 = vpack.c.b16 %v1093, %v1085
    %v1366 = vpack.c.b16 %v1094, %v1086
    %v1367 = vpack.c.b16 %v1095, %v1087
    %v1368 = vpack.c.b16 %v1096, %v1088
    %v1369 = vpack.c.b16 %v1097, %v1089
    %v1370 = vpack.c.b16 %v1098, %v1090
    %v1371 = vpack.c.b16 %v1099, %v1091
    %v1372 = vpack.c.b16 %v1100, %v1092
    %v1373 = vpack.c.b16 %v1109, %v1101
    %v1374 = vpack.c.b16 %v1110, %v1102
    %v1375 = vpack.c.b16 %v1111, %v1103
    %v1376 = vpack.c.b16 %v1112, %v1104
    %v1377 = vpack.c.b16 %v1113, %v1105
    %v1378 = vpack.c.b16 %v1114, %v1106
    %v1379 = vpack.c.b16 %v1115, %v1107
    %v1380 = vpack.c.b16 %v1116, %v1108
    %v1381 = vpack.c.b16 %v1125, %v1117
    %v1382 = vpack.c.b16 %v1126, %v1118
    %v1383 = vpack.c.b16 %v1127, %v1119
    %v1384 = vpack.c.b16 %v1128, %v1120
    %v1385 = vpack.c.b16 %v1129, %v1121
    %v1386 = vpack.c.b16 %v1130, %v1122
    %v1387 = vpack.c.b16 %v1131, %v1123
    %v1388 = vpack.c.b16 %v1132, %v1124
    %1645 = vmatprep.subr.bf16.mxu0 %v1190
    %1646 = vmatpush1.bf16.xpose.msra.mxu0 %v1189
    %1647 = vmatprep.subr.bf16.mxu0 %v1182
    %1648 = vmatpush1.bf16.xpose.msra.mxu0 %v1181
    %1649 = vmatprep.subr.bf16.mxu0 %v1174
    %1650 = vmatpush1.bf16.xpose.msra.mxu0 %v1173
    %1651 = vmatprep.subr.bf16.mxu0 %v1166
    %1652 = vmatpush1.bf16.xpose.msra.mxu0 %v1165
    %1653 = vmatprep.subr.bf16.mxu0 %v1158
    %1654 = vmatpush1.bf16.xpose.msra.mxu0 %v1157
    %1655 = vmatprep.subr.bf16.mxu0 %v1150
    %1656 = vmatpush1.bf16.xpose.msra.mxu0 %v1149
    %1657 = vmatprep.subr.bf16.mxu0 %v1142
    %1658 = vmatpush1.bf16.xpose.msra.mxu0 %v1141
    %1659 = vmatprep.subr.bf16.mxu0 %v1134
    %1660 = vmatpush1.bf16.xpose.msra.mxu0 %v1133
    %1661 = vmatprep.subr.bf16.mxu0 %v1254
    %1662 = vmatpush2.bf16.xpose.msra.mxu0 %v1253
    %1663 = vmatprep.subr.bf16.mxu0 %v1246
    %1664 = vmatpush2.bf16.xpose.msra.mxu0 %v1245
    %1665 = vmatprep.subr.bf16.mxu0 %v1238
    %1666 = vmatpush2.bf16.xpose.msra.mxu0 %v1237
    %1667 = vmatprep.subr.bf16.mxu0 %v1230
    %1668 = vmatpush2.bf16.xpose.msra.mxu0 %v1229
    %1669 = vmatprep.subr.bf16.mxu0 %v1222
    %1670 = vmatpush2.bf16.xpose.msra.mxu0 %v1221
    %1671 = vmatprep.subr.bf16.mxu0 %v1214
    %1672 = vmatpush2.bf16.xpose.msra.mxu0 %v1213
    %1673 = vmatprep.subr.bf16.mxu0 %v1206
    %1674 = vmatpush2.bf16.xpose.msra.mxu0 %v1205
    %1675 = vmatprep.subr.bf16.mxu0 %v1198
    %1676 = vmatpush2.bf16.xpose.msra.mxu0 %v1197
    %1677 = vmatprep.mubr.bf16.mxu0 %v358
    %1678 = vmatmul.mubr.bf16.gmra.mxu0 %v357
    %v1679 = vpop.f32.mrf.mxu0
    %v1680 = vadd.f32 0.0, %v1679
    %v1681 = vpop.f32.mrf.mxu0
    %v1682 = vadd.f32 0.0, %v1681
    %v1683 = vpop.f32.mrf.mxu0
    %v1684 = vpop.f32.mrf.mxu0
    %1685 = vdwg.mxu0
    %1686 = vmatprep.subr.bf16.mxu0 %v1192
    %1687 = vmatpush1.bf16.xpose.msra.mxu0 %v1191
    %1688 = vmatprep.subr.bf16.mxu0 %v1184
    %1689 = vmatpush1.bf16.xpose.msra.mxu0 %v1183
    %1690 = vmatprep.subr.bf16.mxu0 %v1176
    %1691 = vmatpush1.bf16.xpose.msra.mxu0 %v1175
    %1692 = vmatprep.subr.bf16.mxu0 %v1168
    %1693 = vmatpush1.bf16.xpose.msra.mxu0 %v1167
    %1694 = vmatprep.subr.bf16.mxu0 %v1160
    %1695 = vmatpush1.bf16.xpose.msra.mxu0 %v1159
    %1696 = vmatprep.subr.bf16.mxu0 %v1152
    %1697 = vmatpush1.bf16.xpose.msra.mxu0 %v1151
    %1698 = vmatprep.subr.bf16.mxu0 %v1144
    %1699 = vmatpush1.bf16.xpose.msra.mxu0 %v1143
    %1700 = vmatprep.subr.bf16.mxu0 %v1136
    %1701 = vmatpush1.bf16.xpose.msra.mxu0 %v1135
    %1702 = vmatprep.subr.bf16.mxu0 %v1256
    %1703 = vmatpush2.bf16.xpose.msra.mxu0 %v1255
    %1704 = vmatprep.subr.bf16.mxu0 %v1248
    %1705 = vmatpush2.bf16.xpose.msra.mxu0 %v1247
    %1706 = vmatprep.subr.bf16.mxu0 %v1240
    %1707 = vmatpush2.bf16.xpose.msra.mxu0 %v1239
    %1708 = vmatprep.subr.bf16.mxu0 %v1232
    %1709 = vmatpush2.bf16.xpose.msra.mxu0 %v1231
    %1710 = vmatprep.subr.bf16.mxu0 %v1224
    %1711 = vmatpush2.bf16.xpose.msra.mxu0 %v1223
    %1712 = vmatprep.subr.bf16.mxu0 %v1216
    %1713 = vmatpush2.bf16.xpose.msra.mxu0 %v1215
    %1714 = vmatprep.subr.bf16.mxu0 %v1208
    %1715 = vmatpush2.bf16.xpose.msra.mxu0 %v1207
    %1716 = vmatprep.subr.bf16.mxu0 %v1200
    %1717 = vmatpush2.bf16.xpose.msra.mxu0 %v1199
    %1718 = vmatprep.mubr.bf16.mxu0 %v360
    %1719 = vmatmul.mubr.bf16.gmra.mxu0 %v359
    %v1720 = vpop.f32.mrf.mxu0
    %v1721 = vadd.f32 %v1680, %v1720
    %v1722 = vpop.f32.mrf.mxu0
    %v1723 = vadd.f32 %v1682, %v1722
    %v1724 = vpop.f32.mrf.mxu0
    %v1725 = vpop.f32.mrf.mxu0
    %1726 = vdwg.mxu0
    %1727 = vmatprep.subr.bf16.mxu0 %v1194
    %1728 = vmatpush1.bf16.xpose.msra.mxu0 %v1193
    %1729 = vmatprep.subr.bf16.mxu0 %v1186
    %1730 = vmatpush1.bf16.xpose.msra.mxu0 %v1185
    %1731 = vmatprep.subr.bf16.mxu0 %v1178
    %1732 = vmatpush1.bf16.xpose.msra.mxu0 %v1177
    %1733 = vmatprep.subr.bf16.mxu0 %v1170
    %1734 = vmatpush1.bf16.xpose.msra.mxu0 %v1169
    %1735 = vmatprep.subr.bf16.mxu0 %v1162
    %1736 = vmatpush1.bf16.xpose.msra.mxu0 %v1161
    %1737 = vmatprep.subr.bf16.mxu0 %v1154
    %1738 = vmatpush1.bf16.xpose.msra.mxu0 %v1153
    %1739 = vmatprep.subr.bf16.mxu0 %v1146
    %1740 = vmatpush1.bf16.xpose.msra.mxu0 %v1145
    %1741 = vmatprep.subr.bf16.mxu0 %v1138
    %1742 = vmatpush1.bf16.xpose.msra.mxu0 %v1137
    %1743 = vmatprep.subr.bf16.mxu0 %v1258
    %1744 = vmatpush2.bf16.xpose.msra.mxu0 %v1257
    %1745 = vmatprep.subr.bf16.mxu0 %v1250
    %1746 = vmatpush2.bf16.xpose.msra.mxu0 %v1249
    %1747 = vmatprep.subr.bf16.mxu0 %v1242
    %1748 = vmatpush2.bf16.xpose.msra.mxu0 %v1241
    %1749 = vmatprep.subr.bf16.mxu0 %v1234
    %1750 = vmatpush2.bf16.xpose.msra.mxu0 %v1233
    %1751 = vmatprep.subr.bf16.mxu0 %v1226
    %1752 = vmatpush2.bf16.xpose.msra.mxu0 %v1225
    %1753 = vmatprep.subr.bf16.mxu0 %v1218
    %1754 = vmatpush2.bf16.xpose.msra.mxu0 %v1217
    %1755 = vmatprep.subr.bf16.mxu0 %v1210
    %1756 = vmatpush2.bf16.xpose.msra.mxu0 %v1209
    %1757 = vmatprep.subr.bf16.mxu0 %v1202
    %1758 = vmatpush2.bf16.xpose.msra.mxu0 %v1201
    %1759 = vmatprep.mubr.bf16.mxu0 %v362
    %1760 = vmatmul.mubr.bf16.gmra.mxu0 %v361
    %v1761 = vpop.f32.mrf.mxu0
    %v1762 = vadd.f32 %v1721, %v1761
    %v1763 = vpop.f32.mrf.mxu0
    %v1764 = vadd.f32 %v1723, %v1763
    %v1765 = vpop.f32.mrf.mxu0
    %v1766 = vpop.f32.mrf.mxu0
    %1767 = vdwg.mxu0
    %1768 = vmatprep.subr.bf16.mxu0 %v1196
    %1769 = vmatpush1.bf16.xpose.msra.mxu0 %v1195
    %1770 = vmatprep.subr.bf16.mxu0 %v1188
    %1771 = vmatpush1.bf16.xpose.msra.mxu0 %v1187
    %1772 = vmatprep.subr.bf16.mxu0 %v1180
    %1773 = vmatpush1.bf16.xpose.msra.mxu0 %v1179
    %1774 = vmatprep.subr.bf16.mxu0 %v1172
    %1775 = vmatpush1.bf16.xpose.msra.mxu0 %v1171
    %1776 = vmatprep.subr.bf16.mxu0 %v1164
    %1777 = vmatpush1.bf16.xpose.msra.mxu0 %v1163
    %1778 = vmatprep.subr.bf16.mxu0 %v1156
    %1779 = vmatpush1.bf16.xpose.msra.mxu0 %v1155
    %1780 = vmatprep.subr.bf16.mxu0 %v1148
    %1781 = vmatpush1.bf16.xpose.msra.mxu0 %v1147
    %1782 = vmatprep.subr.bf16.mxu0 %v1140
    %1783 = vmatpush1.bf16.xpose.msra.mxu0 %v1139
    %1784 = vmatprep.subr.bf16.mxu0 %v1260
    %1785 = vmatpush2.bf16.xpose.msra.mxu0 %v1259
    %1786 = vmatprep.subr.bf16.mxu0 %v1252
    %1787 = vmatpush2.bf16.xpose.msra.mxu0 %v1251
    %1788 = vmatprep.subr.bf16.mxu0 %v1244
    %1789 = vmatpush2.bf16.xpose.msra.mxu0 %v1243
    %1790 = vmatprep.subr.bf16.mxu0 %v1236
    %1791 = vmatpush2.bf16.xpose.msra.mxu0 %v1235
    %1792 = vmatprep.subr.bf16.mxu0 %v1228
    %1793 = vmatpush2.bf16.xpose.msra.mxu0 %v1227
    %1794 = vmatprep.subr.bf16.mxu0 %v1220
    %1795 = vmatpush2.bf16.xpose.msra.mxu0 %v1219
    %1796 = vmatprep.subr.bf16.mxu0 %v1212
    %1797 = vmatpush2.bf16.xpose.msra.mxu0 %v1211
    %1798 = vmatprep.subr.bf16.mxu0 %v1204
    %1799 = vmatpush2.bf16.xpose.msra.mxu0 %v1203
    %1800 = vmatprep.mubr.bf16.mxu0 %v364
    %1801 = vmatmul.mubr.bf16.gmra.mxu0 %v363
    %v1802 = vpop.f32.mrf.mxu0
    %v1803 = vadd.f32 %v1762, %v1802
    %v1804 = vpop.f32.mrf.mxu0
    %v1805 = vadd.f32 %v1764, %v1804
    %v1806 = vpop.f32.mrf.mxu0
    %v1807 = vpop.f32.mrf.mxu0
    %1808 = vdwg.mxu0
    %1809 = vmatprep.subr.bf16.mxu0 %v1318
    %1810 = vmatpush1.bf16.xpose.msra.mxu0 %v1317
    %1811 = vmatprep.subr.bf16.mxu0 %v1310
    %1812 = vmatpush1.bf16.xpose.msra.mxu0 %v1309
    %1813 = vmatprep.subr.bf16.mxu0 %v1302
    %1814 = vmatpush1.bf16.xpose.msra.mxu0 %v1301
    %1815 = vmatprep.subr.bf16.mxu0 %v1294
    %1816 = vmatpush1.bf16.xpose.msra.mxu0 %v1293
    %1817 = vmatprep.subr.bf16.mxu0 %v1286
    %1818 = vmatpush1.bf16.xpose.msra.mxu0 %v1285
    %1819 = vmatprep.subr.bf16.mxu0 %v1278
    %1820 = vmatpush1.bf16.xpose.msra.mxu0 %v1277
    %1821 = vmatprep.subr.bf16.mxu0 %v1270
    %1822 = vmatpush1.bf16.xpose.msra.mxu0 %v1269
    %1823 = vmatprep.subr.bf16.mxu0 %v1262
    %1824 = vmatpush1.bf16.xpose.msra.mxu0 %v1261
    %1825 = vmatprep.subr.bf16.mxu0 %v1382
    %1826 = vmatpush2.bf16.xpose.msra.mxu0 %v1381
    %1827 = vmatprep.subr.bf16.mxu0 %v1374
    %1828 = vmatpush2.bf16.xpose.msra.mxu0 %v1373
    %1829 = vmatprep.subr.bf16.mxu0 %v1366
    %1830 = vmatpush2.bf16.xpose.msra.mxu0 %v1365
    %1831 = vmatprep.subr.bf16.mxu0 %v1358
    %1832 = vmatpush2.bf16.xpose.msra.mxu0 %v1357
    %1833 = vmatprep.subr.bf16.mxu0 %v1350
    %1834 = vmatpush2.bf16.xpose.msra.mxu0 %v1349
    %1835 = vmatprep.subr.bf16.mxu0 %v1342
    %1836 = vmatpush2.bf16.xpose.msra.mxu0 %v1341
    %1837 = vmatprep.subr.bf16.mxu0 %v1334
    %1838 = vmatpush2.bf16.xpose.msra.mxu0 %v1333
    %1839 = vmatprep.subr.bf16.mxu0 %v1326
    %1840 = vmatpush2.bf16.xpose.msra.mxu0 %v1325
    %1841 = vmatprep.mubr.bf16.mxu0 %v358
    %1842 = vmatmul.mubr.bf16.gmra.mxu0 %v357
    %v1843 = vpop.f32.mrf.mxu0
    %v1844 = vadd.f32 0.0, %v1843
    %v1845 = vpop.f32.mrf.mxu0
    %v1846 = vadd.f32 0.0, %v1845
    %v1847 = vpop.f32.mrf.mxu0
    %v1848 = vpop.f32.mrf.mxu0
    %1849 = vdwg.mxu0
    %1850 = vmatprep.subr.bf16.mxu0 %v1320
    %1851 = vmatpush1.bf16.xpose.msra.mxu0 %v1319
    %1852 = vmatprep.subr.bf16.mxu0 %v1312
    %1853 = vmatpush1.bf16.xpose.msra.mxu0 %v1311
    %1854 = vmatprep.subr.bf16.mxu0 %v1304
    %1855 = vmatpush1.bf16.xpose.msra.mxu0 %v1303
    %1856 = vmatprep.subr.bf16.mxu0 %v1296
    %1857 = vmatpush1.bf16.xpose.msra.mxu0 %v1295
    %1858 = vmatprep.subr.bf16.mxu0 %v1288
    %1859 = vmatpush1.bf16.xpose.msra.mxu0 %v1287
    %1860 = vmatprep.subr.bf16.mxu0 %v1280
    %1861 = vmatpush1.bf16.xpose.msra.mxu0 %v1279
    %1862 = vmatprep.subr.bf16.mxu0 %v1272
    %1863 = vmatpush1.bf16.xpose.msra.mxu0 %v1271
    %1864 = vmatprep.subr.bf16.mxu0 %v1264
    %1865 = vmatpush1.bf16.xpose.msra.mxu0 %v1263
    %1866 = vmatprep.subr.bf16.mxu0 %v1384
    %1867 = vmatpush2.bf16.xpose.msra.mxu0 %v1383
    %1868 = vmatprep.subr.bf16.mxu0 %v1376
    %1869 = vmatpush2.bf16.xpose.msra.mxu0 %v1375
    %1870 = vmatprep.subr.bf16.mxu0 %v1368
    %1871 = vmatpush2.bf16.xpose.msra.mxu0 %v1367
    %1872 = vmatprep.subr.bf16.mxu0 %v1360
    %1873 = vmatpush2.bf16.xpose.msra.mxu0 %v1359
    %1874 = vmatprep.subr.bf16.mxu0 %v1352
    %1875 = vmatpush2.bf16.xpose.msra.mxu0 %v1351
    %1876 = vmatprep.subr.bf16.mxu0 %v1344
    %1877 = vmatpush2.bf16.xpose.msra.mxu0 %v1343
    %1878 = vmatprep.subr.bf16.mxu0 %v1336
    %1879 = vmatpush2.bf16.xpose.msra.mxu0 %v1335
    %1880 = vmatprep.subr.bf16.mxu0 %v1328
    %1881 = vmatpush2.bf16.xpose.msra.mxu0 %v1327
    %1882 = vmatprep.mubr.bf16.mxu0 %v360
    %1883 = vmatmul.mubr.bf16.gmra.mxu0 %v359
    %v1884 = vpop.f32.mrf.mxu0
    %v1885 = vadd.f32 %v1844, %v1884
    %v1886 = vpop.f32.mrf.mxu0
    %v1887 = vadd.f32 %v1846, %v1886
    %v1888 = vpop.f32.mrf.mxu0
    %v1889 = vpop.f32.mrf.mxu0
    %1890 = vdwg.mxu0
    %1891 = vmatprep.subr.bf16.mxu0 %v1322
    %1892 = vmatpush1.bf16.xpose.msra.mxu0 %v1321
    %1893 = vmatprep.subr.bf16.mxu0 %v1314
    %1894 = vmatpush1.bf16.xpose.msra.mxu0 %v1313
    %1895 = vmatprep.subr.bf16.mxu0 %v1306
    %1896 = vmatpush1.bf16.xpose.msra.mxu0 %v1305
    %1897 = vmatprep.subr.bf16.mxu0 %v1298
    %1898 = vmatpush1.bf16.xpose.msra.mxu0 %v1297
    %1899 = vmatprep.subr.bf16.mxu0 %v1290
    %1900 = vmatpush1.bf16.xpose.msra.mxu0 %v1289
    %1901 = vmatprep.subr.bf16.mxu0 %v1282
    %1902 = vmatpush1.bf16.xpose.msra.mxu0 %v1281
    %1903 = vmatprep.subr.bf16.mxu0 %v1274
    %1904 = vmatpush1.bf16.xpose.msra.mxu0 %v1273
    %1905 = vmatprep.subr.bf16.mxu0 %v1266
    %1906 = vmatpush1.bf16.xpose.msra.mxu0 %v1265
    %1907 = vmatprep.subr.bf16.mxu0 %v1386
    %1908 = vmatpush2.bf16.xpose.msra.mxu0 %v1385
    %1909 = vmatprep.subr.bf16.mxu0 %v1378
    %1910 = vmatpush2.bf16.xpose.msra.mxu0 %v1377
    %1911 = vmatprep.subr.bf16.mxu0 %v1370
    %1912 = vmatpush2.bf16.xpose.msra.mxu0 %v1369
    %1913 = vmatprep.subr.bf16.mxu0 %v1362
    %1914 = vmatpush2.bf16.xpose.msra.mxu0 %v1361
    %1915 = vmatprep.subr.bf16.mxu0 %v1354
    %1916 = vmatpush2.bf16.xpose.msra.mxu0 %v1353
    %1917 = vmatprep.subr.bf16.mxu0 %v1346
    %1918 = vmatpush2.bf16.xpose.msra.mxu0 %v1345
    %1919 = vmatprep.subr.bf16.mxu0 %v1338
    %1920 = vmatpush2.bf16.xpose.msra.mxu0 %v1337
    %1921 = vmatprep.subr.bf16.mxu0 %v1330
    %1922 = vmatpush2.bf16.xpose.msra.mxu0 %v1329
    %1923 = vmatprep.mubr.bf16.mxu0 %v362
    %1924 = vmatmul.mubr.bf16.gmra.mxu0 %v361
    %v1925 = vpop.f32.mrf.mxu0
    %v1926 = vadd.f32 %v1885, %v1925
    %v1927 = vpop.f32.mrf.mxu0
    %v1928 = vadd.f32 %v1887, %v1927
    %v1929 = vpop.f32.mrf.mxu0
    %v1930 = vpop.f32.mrf.mxu0
    %1931 = vdwg.mxu0
    %1932 = vmatprep.subr.bf16.mxu0 %v1324
    %1933 = vmatpush1.bf16.xpose.msra.mxu0 %v1323
    %1934 = vmatprep.subr.bf16.mxu0 %v1316
    %1935 = vmatpush1.bf16.xpose.msra.mxu0 %v1315
    %1936 = vmatprep.subr.bf16.mxu0 %v1308
    %1937 = vmatpush1.bf16.xpose.msra.mxu0 %v1307
    %1938 = vmatprep.subr.bf16.mxu0 %v1300
    %1939 = vmatpush1.bf16.xpose.msra.mxu0 %v1299
    %1940 = vmatprep.subr.bf16.mxu0 %v1292
    %1941 = vmatpush1.bf16.xpose.msra.mxu0 %v1291
    %1942 = vmatprep.subr.bf16.mxu0 %v1284
    %1943 = vmatpush1.bf16.xpose.msra.mxu0 %v1283
    %1944 = vmatprep.subr.bf16.mxu0 %v1276
    %1945 = vmatpush1.bf16.xpose.msra.mxu0 %v1275
    %1946 = vmatprep.subr.bf16.mxu0 %v1268
    %1947 = vmatpush1.bf16.xpose.msra.mxu0 %v1267
    %1948 = vmatprep.subr.bf16.mxu0 %v1388
    %1949 = vmatpush2.bf16.xpose.msra.mxu0 %v1387
    %1950 = vmatprep.subr.bf16.mxu0 %v1380
    %1951 = vmatpush2.bf16.xpose.msra.mxu0 %v1379
    %1952 = vmatprep.subr.bf16.mxu0 %v1372
    %1953 = vmatpush2.bf16.xpose.msra.mxu0 %v1371
    %1954 = vmatprep.subr.bf16.mxu0 %v1364
    %1955 = vmatpush2.bf16.xpose.msra.mxu0 %v1363
    %1956 = vmatprep.subr.bf16.mxu0 %v1356
    %1957 = vmatpush2.bf16.xpose.msra.mxu0 %v1355
    %1958 = vmatprep.subr.bf16.mxu0 %v1348
    %1959 = vmatpush2.bf16.xpose.msra.mxu0 %v1347
    %1960 = vmatprep.subr.bf16.mxu0 %v1340
    %1961 = vmatpush2.bf16.xpose.msra.mxu0 %v1339
    %1962 = vmatprep.subr.bf16.mxu0 %v1332
    %1963 = vmatpush2.bf16.xpose.msra.mxu0 %v1331
    %1964 = vmatprep.mubr.bf16.mxu0 %v364
    %1965 = vmatmul.mubr.bf16.gmra.mxu0 %v363
    %v1966 = vpop.f32.mrf.mxu0
    %v1967 = vadd.f32 %v1926, %v1966
    %v1968 = vpop.f32.mrf.mxu0
    %v1969 = vadd.f32 %v1928, %v1968
    %v1970 = vpop.f32.mrf.mxu0
    %v1971 = vpop.f32.mrf.mxu0
    %1972 = vdwg.mxu0
    %v1973 = vmax.f32 %v1803, %v1805
    %v1974 = vmax.f32 %v1973, %v1967
    %v1975 = vmax.f32 %v1974, %v1969
    %v1976 = vsub.f32 %v1803, %v1975
    %v1977 = vmul.f32 %v1976, 1.442695
    %v1978 = vpow.pop %v1977
    %v1979 = vsub.f32 %v1805, %v1975
    %v1980 = vmul.f32 %v1979, 1.442695
    %v1981 = vpow.pop %v1980
    %v1982 = vsub.f32 %v1967, %v1975
    %v1983 = vmul.f32 %v1982, 1.442695
    %v1984 = vpow.pop %v1983
    %v1985 = vsub.f32 %v1969, %v1975
    %v1986 = vmul.f32 %v1985, 1.442695
    %v1987 = vpow.pop %v1986
    %v1988 = vadd.f32 %v1978, %v1981
    %v1989 = vadd.f32 %v1988, %v1984
    %v1990 = vadd.f32 %v1989, %v1987
    %v1991 = vrcp.pop %v1990
    %v1992 = vmul.f32 %v1978, %v1991
    %v1993 = vmul.f32 %v1981, %v1991
    %v1994 = vmul.f32 %v1984, %v1991
    %v1995 = vmul.f32 %v1987, %v1991
    %vm1996 = vcmp.gt.f32.partialorder %v1992, 0.0025
    %v1997 = vsel %vm1996, %v1992, 0.0
    %vm1998 = vcmp.gt.f32.partialorder %v1993, 0.0025
    %v1999 = vsel %vm1998, %v1993, 0.0
    %vm2000 = vcmp.gt.f32.partialorder %v1994, 0.0025
    %v2001 = vsel %vm2000, %v1994, 0.0
    %vm2002 = vcmp.gt.f32.partialorder %v1995, 0.0025
    %v2003 = vsel %vm2002, %v1995, 0.0
    %v2004 = vadd.f32 %v1997, %v1999
    %v2005 = vadd.f32 %v2004, %v2001
    %v2006 = vadd.f32 %v2005, %v2003
    %v2007 = vmax.f32 %v2006, 1e-12
    %v2008 = vrcp.pop %v2007
    %v2009 = vld [vmem:[#allocation7] sm:$0xff]
    %v2010 = vld [vmem:[#allocation7 + $0x8] sm:$0xff]
    %v2011 = vld [vmem:[#allocation7 + $0x10] sm:$0xff]
    %v2012 = vld [vmem:[#allocation7 + $0x18] sm:$0xff]
    %v2013 = vld [vmem:[#allocation7 + $0x20] sm:$0xff]
    %v2014 = vld [vmem:[#allocation7 + $0x28] sm:$0xff]
    %v2015 = vld [vmem:[#allocation7 + $0x30] sm:$0xff]
    %v2016 = vld [vmem:[#allocation7 + $0x38] sm:$0xff]
    %v2017 = vld [vmem:[#allocation7 + $0x40] sm:$0xff]
    %v2018 = vld [vmem:[#allocation7 + $0x48] sm:$0xff]
    %v2019 = vld [vmem:[#allocation7 + $0x50] sm:$0xff]
    %v2020 = vld [vmem:[#allocation7 + $0x58] sm:$0xff]
    %v2021 = vld [vmem:[#allocation7 + $0x60] sm:$0xff]
    %v2022 = vld [vmem:[#allocation7 + $0x68] sm:$0xff]
    %v2023 = vld [vmem:[#allocation7 + $0x70] sm:$0xff]
    %v2024 = vld [vmem:[#allocation7 + $0x78] sm:$0xff]
    %v2025 = vmul.f32 %v1997, %v2008
    %v2026 = vpack.c.bf16 %v2025, %v2025
    %v2043 = vunpack.c.l.b16 %v2009
    %v2044 = vunpack.c.h.b16 %v2009
    %v2045 = vunpack.c.l.b16 %v2010
    %v2046 = vunpack.c.h.b16 %v2010
    %v2047 = vunpack.c.l.b16 %v2011
    %v2048 = vunpack.c.h.b16 %v2011
    %v2049 = vunpack.c.l.b16 %v2012
    %v2050 = vunpack.c.h.b16 %v2012
    %v2051 = vunpack.c.l.b16 %v2013
    %v2052 = vunpack.c.h.b16 %v2013
    %v2053 = vunpack.c.l.b16 %v2014
    %v2054 = vunpack.c.h.b16 %v2014
    %v2055 = vunpack.c.l.b16 %v2015
    %v2056 = vunpack.c.h.b16 %v2015
    %v2057 = vunpack.c.l.b16 %v2016
    %v2058 = vunpack.c.h.b16 %v2016
    %v2059 = vunpack.c.l.b16 %v2017
    %v2060 = vunpack.c.h.b16 %v2017
    %v2061 = vunpack.c.l.b16 %v2018
    %v2062 = vunpack.c.h.b16 %v2018
    %v2063 = vunpack.c.l.b16 %v2019
    %v2064 = vunpack.c.h.b16 %v2019
    %v2065 = vunpack.c.l.b16 %v2020
    %v2066 = vunpack.c.h.b16 %v2020
    %v2067 = vunpack.c.l.b16 %v2021
    %v2068 = vunpack.c.h.b16 %v2021
    %v2069 = vunpack.c.l.b16 %v2022
    %v2070 = vunpack.c.h.b16 %v2022
    %v2071 = vunpack.c.l.b16 %v2023
    %v2072 = vunpack.c.h.b16 %v2023
    %v2073 = vunpack.c.l.b16 %v2024
    %v2074 = vunpack.c.h.b16 %v2024
    %v2075 = vpack.c.b16 %v2045, %v2043
    %v2076 = vpack.c.b16 %v2046, %v2044
    %v2077 = vpack.c.b16 %v2049, %v2047
    %v2078 = vpack.c.b16 %v2050, %v2048
    %v2079 = vpack.c.b16 %v2053, %v2051
    %v2080 = vpack.c.b16 %v2054, %v2052
    %v2081 = vpack.c.b16 %v2057, %v2055
    %v2082 = vpack.c.b16 %v2058, %v2056
    %v2083 = vpack.c.b16 %v2061, %v2059
    %v2084 = vpack.c.b16 %v2062, %v2060
    %v2085 = vpack.c.b16 %v2065, %v2063
    %v2086 = vpack.c.b16 %v2066, %v2064
    %v2087 = vpack.c.b16 %v2069, %v2067
    %v2088 = vpack.c.b16 %v2070, %v2068
    %v2089 = vpack.c.b16 %v2073, %v2071
    %v2090 = vpack.c.b16 %v2074, %v2072
    %2107 = vmatprep.subr.bf16.mxu0 %v2090
    %2108 = vmatpush1.bf16.msra.mxu0 %v2089
    %2109 = vmatprep.subr.bf16.mxu0 %v2088
    %2110 = vmatpush1.bf16.msra.mxu0 %v2087
    %2111 = vmatprep.subr.bf16.mxu0 %v2086
    %2112 = vmatpush1.bf16.msra.mxu0 %v2085
    %2113 = vmatprep.subr.bf16.mxu0 %v2084
    %2114 = vmatpush1.bf16.msra.mxu0 %v2083
    %2115 = vmatprep.subr.bf16.mxu0 %v2082
    %2116 = vmatpush1.bf16.msra.mxu0 %v2081
    %2117 = vmatprep.subr.bf16.mxu0 %v2080
    %2118 = vmatpush1.bf16.msra.mxu0 %v2079
    %2119 = vmatprep.subr.bf16.mxu0 %v2078
    %2120 = vmatpush1.bf16.msra.mxu0 %v2077
    %2121 = vmatprep.subr.bf16.mxu0 %v2076
    %2122 = vmatpush1.bf16.msra.mxu0 %v2075
    %2123 = vmatprep.subr.bf16.mxu0 0
    %2124 = vmatpush2.bf16.msra.mxu0 0
    %2125 = vmatprep.subr.bf16.mxu0 0
    %2126 = vmatpush2.bf16.msra.mxu0 0
    %2127 = vmatprep.subr.bf16.mxu0 0
    %2128 = vmatpush2.bf16.msra.mxu0 0
    %2129 = vmatprep.subr.bf16.mxu0 0
    %2130 = vmatpush2.bf16.msra.mxu0 0
    %2131 = vmatprep.subr.bf16.mxu0 0
    %2132 = vmatpush2.bf16.msra.mxu0 0
    %2133 = vmatprep.subr.bf16.mxu0 0
    %2134 = vmatpush2.bf16.msra.mxu0 0
    %2135 = vmatprep.subr.bf16.mxu0 0
    %2136 = vmatpush2.bf16.msra.mxu0 0
    %2137 = vmatprep.subr.bf16.mxu0 0
    %2138 = vmatpush2.bf16.msra.mxu0 0
    %2139 = vmatprep.mubr.bf16.mxu0 0
    %2140 = vmatmul.mubr.bf16.gmra.mxu0 %v2026
    %v2141 = vpop.f32.mrf.mxu0
    %v2142 = vadd.f32 0.0, %v2141
    %v2143 = vpop.f32.mrf.mxu0
    %v2144 = vadd.f32 0.0, %v2143
    %v2145 = vpop.f32.mrf.mxu0
    %v2146 = vpop.f32.mrf.mxu0
    %2147 = vdwg.mxu0
    %v2148 = vxor.u32 %v2142, 2147483648
    %v2149 = vxor.u32 %v2144, 2147483648
    %v2150 = vmul.f32 %v2148, 1.442695
    %v2151 = vpow.pop %v2150
    %v2152 = vmul.f32 %v2149, 1.442695
    %v2153 = vpow.pop %v2152
    %v2154 = vadd.f32 %v2151, 1.0
    %v2155 = vadd.f32 %v2153, 1.0
    %v2156 = vrcp.pop %v2154
    %v2157 = vmul.f32 1.0, %v2156
    %v2158 = vrcp.pop %v2155
    %v2159 = vmul.f32 1.0, %v2158
    %v2162 = vcombine.low %v2157, %v2159
    %v2164 = vunpack.c.l.s4 1983009808
    %v2165 = vunpack.c.0.s8 %v2164
    %v2166 = vlaneseq
    %v2167 = vshrl.u32 %v2166, 7
    %v2168 = vsub.s32 %v2165, %v2167
    %v2169 = vrot.slane %v2162, %v2168
    %2171 = vst [vmem:[#allocation8] sm:$0xf] %v2169
    %v2172 = vmul.f32 %v1999, %v2008
    %v2173 = vpack.c.bf16 %v2172, %v2172
    %2174 = vmatprep.subr.bf16.mxu0 %v2090
    %2175 = vmatpush1.bf16.msra.mxu0 %v2089
    %2176 = vmatprep.subr.bf16.mxu0 %v2088
    %2177 = vmatpush1.bf16.msra.mxu0 %v2087
    %2178 = vmatprep.subr.bf16.mxu0 %v2086
    %2179 = vmatpush1.bf16.msra.mxu0 %v2085
    %2180 = vmatprep.subr.bf16.mxu0 %v2084
    %2181 = vmatpush1.bf16.msra.mxu0 %v2083
    %2182 = vmatprep.subr.bf16.mxu0 %v2082
    %2183 = vmatpush1.bf16.msra.mxu0 %v2081
    %2184 = vmatprep.subr.bf16.mxu0 %v2080
    %2185 = vmatpush1.bf16.msra.mxu0 %v2079
    %2186 = vmatprep.subr.bf16.mxu0 %v2078
    %2187 = vmatpush1.bf16.msra.mxu0 %v2077
    %2188 = vmatprep.subr.bf16.mxu0 %v2076
    %2189 = vmatpush1.bf16.msra.mxu0 %v2075
    %2190 = vmatprep.subr.bf16.mxu0 0
    %2191 = vmatpush2.bf16.msra.mxu0 0
    %2192 = vmatprep.subr.bf16.mxu0 0
    %2193 = vmatpush2.bf16.msra.mxu0 0
    %2194 = vmatprep.subr.bf16.mxu0 0
    %2195 = vmatpush2.bf16.msra.mxu0 0
    %2196 = vmatprep.subr.bf16.mxu0 0
    %2197 = vmatpush2.bf16.msra.mxu0 0
    %2198 = vmatprep.subr.bf16.mxu0 0
    %2199 = vmatpush2.bf16.msra.mxu0 0
    %2200 = vmatprep.subr.bf16.mxu0 0
    %2201 = vmatpush2.bf16.msra.mxu0 0
    %2202 = vmatprep.subr.bf16.mxu0 0
    %2203 = vmatpush2.bf16.msra.mxu0 0
    %2204 = vmatprep.subr.bf16.mxu0 0
    %2205 = vmatpush2.bf16.msra.mxu0 0
    %2206 = vmatprep.mubr.bf16.mxu0 0
    %2207 = vmatmul.mubr.bf16.gmra.mxu0 %v2173
    %v2208 = vpop.f32.mrf.mxu0
    %v2209 = vadd.f32 0.0, %v2208
    %v2210 = vpop.f32.mrf.mxu0
    %v2211 = vadd.f32 0.0, %v2210
    %v2212 = vpop.f32.mrf.mxu0
    %v2213 = vpop.f32.mrf.mxu0
    %2214 = vdwg.mxu0
    %v2215 = vxor.u32 %v2209, 2147483648
    %v2216 = vxor.u32 %v2211, 2147483648
    %v2217 = vmul.f32 %v2215, 1.442695
    %v2218 = vpow.pop %v2217
    %v2219 = vmul.f32 %v2216, 1.442695
    %v2220 = vpow.pop %v2219
    %v2221 = vadd.f32 %v2218, 1.0
    %v2222 = vadd.f32 %v2220, 1.0
    %v2223 = vrcp.pop %v2221
    %v2224 = vmul.f32 1.0, %v2223
    %v2225 = vrcp.pop %v2222
    %v2226 = vmul.f32 1.0, %v2225
    %v2229 = vcombine.low %v2224, %v2226
    %v2231 = vunpack.c.l.s4 1983009808
    %v2232 = vunpack.c.0.s8 %v2231
    %v2233 = vlaneseq
    %v2234 = vshrl.u32 %v2233, 7
    %v2235 = vsub.s32 %v2232, %v2234
    %v2236 = vrot.slane %v2229, %v2235
    %2238 = vst [vmem:[#allocation8 + $0x4] sm:$0xf] %v2236
    %v2239 = vmul.f32 %v2001, %v2008
    %v2240 = vpack.c.bf16 %v2239, %v2239
    %2241 = vmatprep.subr.bf16.mxu0 %v2090
    %2242 = vmatpush1.bf16.msra.mxu0 %v2089
    %2243 = vmatprep.subr.bf16.mxu0 %v2088
    %2244 = vmatpush1.bf16.msra.mxu0 %v2087
    %2245 = vmatprep.subr.bf16.mxu0 %v2086
    %2246 = vmatpush1.bf16.msra.mxu0 %v2085
    %2247 = vmatprep.subr.bf16.mxu0 %v2084
    %2248 = vmatpush1.bf16.msra.mxu0 %v2083
    %2249 = vmatprep.subr.bf16.mxu0 %v2082
    %2250 = vmatpush1.bf16.msra.mxu0 %v2081
    %2251 = vmatprep.subr.bf16.mxu0 %v2080
    %2252 = vmatpush1.bf16.msra.mxu0 %v2079
    %2253 = vmatprep.subr.bf16.mxu0 %v2078
    %2254 = vmatpush1.bf16.msra.mxu0 %v2077
    %2255 = vmatprep.subr.bf16.mxu0 %v2076
    %2256 = vmatpush1.bf16.msra.mxu0 %v2075
    %2257 = vmatprep.subr.bf16.mxu0 0
    %2258 = vmatpush2.bf16.msra.mxu0 0
    %2259 = vmatprep.subr.bf16.mxu0 0
    %2260 = vmatpush2.bf16.msra.mxu0 0
    %2261 = vmatprep.subr.bf16.mxu0 0
    %2262 = vmatpush2.bf16.msra.mxu0 0
    %2263 = vmatprep.subr.bf16.mxu0 0
    %2264 = vmatpush2.bf16.msra.mxu0 0
    %2265 = vmatprep.subr.bf16.mxu0 0
    %2266 = vmatpush2.bf16.msra.mxu0 0
    %2267 = vmatprep.subr.bf16.mxu0 0
    %2268 = vmatpush2.bf16.msra.mxu0 0
    %2269 = vmatprep.subr.bf16.mxu0 0
    %2270 = vmatpush2.bf16.msra.mxu0 0
    %2271 = vmatprep.subr.bf16.mxu0 0
    %2272 = vmatpush2.bf16.msra.mxu0 0
    %2273 = vmatprep.mubr.bf16.mxu0 0
    %2274 = vmatmul.mubr.bf16.gmra.mxu0 %v2240
    %v2275 = vpop.f32.mrf.mxu0
    %v2276 = vadd.f32 0.0, %v2275
    %v2277 = vpop.f32.mrf.mxu0
    %v2278 = vadd.f32 0.0, %v2277
    %v2279 = vpop.f32.mrf.mxu0
    %v2280 = vpop.f32.mrf.mxu0
    %2281 = vdwg.mxu0
    %v2282 = vxor.u32 %v2276, 2147483648
    %v2283 = vxor.u32 %v2278, 2147483648
    %v2284 = vmul.f32 %v2282, 1.442695
    %v2285 = vpow.pop %v2284
    %v2286 = vmul.f32 %v2283, 1.442695
    %v2287 = vpow.pop %v2286
    %v2288 = vadd.f32 %v2285, 1.0
    %v2289 = vadd.f32 %v2287, 1.0
    %v2290 = vrcp.pop %v2288
    %v2291 = vmul.f32 1.0, %v2290
    %v2292 = vrcp.pop %v2289
    %v2293 = vmul.f32 1.0, %v2292
    %v2296 = vcombine.low %v2291, %v2293
    %v2298 = vunpack.c.l.s4 1983009808
    %v2299 = vunpack.c.0.s8 %v2298
    %v2300 = vlaneseq
    %v2301 = vshrl.u32 %v2300, 7
    %v2302 = vsub.s32 %v2299, %v2301
    %v2303 = vrot.slane %v2296, %v2302
    %2305 = vst [vmem:[#allocation8 + $0x8] sm:$0xf] %v2303
    %v2306 = vmul.f32 %v2003, %v2008
    %v2307 = vpack.c.bf16 %v2306, %v2306
    %2308 = vmatprep.subr.bf16.mxu0 %v2090
    %2309 = vmatpush1.bf16.msra.mxu0 %v2089
    %2310 = vmatprep.subr.bf16.mxu0 %v2088
    %2311 = vmatpush1.bf16.msra.mxu0 %v2087
    %2312 = vmatprep.subr.bf16.mxu0 %v2086
    %2313 = vmatpush1.bf16.msra.mxu0 %v2085
    %2314 = vmatprep.subr.bf16.mxu0 %v2084
    %2315 = vmatpush1.bf16.msra.mxu0 %v2083
    %2316 = vmatprep.subr.bf16.mxu0 %v2082
    %2317 = vmatpush1.bf16.msra.mxu0 %v2081
    %2318 = vmatprep.subr.bf16.mxu0 %v2080
    %2319 = vmatpush1.bf16.msra.mxu0 %v2079
    %2320 = vmatprep.subr.bf16.mxu0 %v2078
    %2321 = vmatpush1.bf16.msra.mxu0 %v2077
    %2322 = vmatprep.subr.bf16.mxu0 %v2076
    %2323 = vmatpush1.bf16.msra.mxu0 %v2075
    %2324 = vmatprep.subr.bf16.mxu0 0
    %2325 = vmatpush2.bf16.msra.mxu0 0
    %2326 = vmatprep.subr.bf16.mxu0 0
    %2327 = vmatpush2.bf16.msra.mxu0 0
    %2328 = vmatprep.subr.bf16.mxu0 0
    %2329 = vmatpush2.bf16.msra.mxu0 0
    %2330 = vmatprep.subr.bf16.mxu0 0
    %2331 = vmatpush2.bf16.msra.mxu0 0
    %2332 = vmatprep.subr.bf16.mxu0 0
    %2333 = vmatpush2.bf16.msra.mxu0 0
    %2334 = vmatprep.subr.bf16.mxu0 0
    %2335 = vmatpush2.bf16.msra.mxu0 0
    %2336 = vmatprep.subr.bf16.mxu0 0
    %2337 = vmatpush2.bf16.msra.mxu0 0
    %2338 = vmatprep.subr.bf16.mxu0 0
    %2339 = vmatpush2.bf16.msra.mxu0 0
    %2340 = vmatprep.mubr.bf16.mxu0 0
    %2341 = vmatmul.mubr.bf16.gmra.mxu0 %v2307
    %v2342 = vpop.f32.mrf.mxu0
    %v2343 = vadd.f32 0.0, %v2342
    %v2344 = vpop.f32.mrf.mxu0
    %v2345 = vadd.f32 0.0, %v2344
    %v2346 = vpop.f32.mrf.mxu0
    %v2347 = vpop.f32.mrf.mxu0
    %2348 = vdwg.mxu0
    %v2349 = vxor.u32 %v2343, 2147483648
    %v2350 = vxor.u32 %v2345, 2147483648
    %v2351 = vmul.f32 %v2349, 1.442695
    %v2352 = vpow.pop %v2351
    %v2353 = vmul.f32 %v2350, 1.442695
    %v2354 = vpow.pop %v2353
    %v2355 = vadd.f32 %v2352, 1.0
    %v2356 = vadd.f32 %v2354, 1.0
    %v2357 = vrcp.pop %v2355
    %v2358 = vmul.f32 1.0, %v2357
    %v2359 = vrcp.pop %v2356
    %v2360 = vmul.f32 1.0, %v2359
    %v2363 = vcombine.low %v2358, %v2360
    %v2365 = vunpack.c.l.s4 1983009808
    %v2366 = vunpack.c.0.s8 %v2365
    %v2367 = vlaneseq
    %v2368 = vshrl.u32 %v2367, 7
    %v2369 = vsub.s32 %v2366, %v2368
    %v2370 = vrot.slane %v2363, %v2369
    %2372 = vst [vmem:[#allocation8 + $0xc] sm:$0xf] %v2370
    // Predicated region
    $region26: #{tpu_custom_call.1} parent=1 // pred_check
      _
    $region27: #{tpu_custom_call.1} parent=1 // pred_check_branch
      %2374 = sbr.rel (0) target = $region29
    $region28: #{tpu_custom_call.1} parent=1 // pred_region
      %s2376 = ssub.s32 256, 256
      %2377 = vsyncadd [#allocation4], %s2376
      %s2379 = sshll.u32 [#allocation8], 4
      %s2380 = int_to_ptr.vmem [resolvable:$true] %s2379
      %2382 = dma.vmem_to_hbm [thread:$0]  %s2380, 256, %s3, [#allocation4]
    $region29: #{tpu_custom_call.1} parent=1 // pred_fallthru
      _
    // Predicated region
    $region30: #{tpu_custom_call.1} parent=1 // pred_check
      _
    $region31: #{tpu_custom_call.1} parent=1 // pred_check_branch
      %2384 = sbr.rel (0) target = $region33
    $region32: #{tpu_custom_call.1} parent=1 // pred_region
      %2385 = dma.done [#allocation4], 256
    $region33: #{tpu_custom_call.1} parent=1 // pred_fallthru
      _
    %2386 = vsyncpa [#allocation3], 1
    %2387 = vsyncpa [#allocation6], 1
    %2388 = vsyncpa [#allocation4], 1

</llo_original>
